<compile_context>
chip_gen: v5e
topology: v5e:2x2
jax: 0.10.0
libtpu: 0.0.40
codegen_flags: <defaults>
</compile_context>

<pallas_src>
import functools

import jax
import jax.numpy as jnp
from jax.experimental import pallas as pl
from jax.experimental.pallas import tpu as pltpu

# 48 MiB fits v7x's 64 MiB physical VMEM with headroom; well inside v5e/v6e's 128 MiB.
_VMEM_LIMIT = 48 * 1024 * 1024


def _compiler_params(dimension_semantics):
    return pltpu.CompilerParams(dimension_semantics=dimension_semantics,
                                vmem_limit_bytes=_VMEM_LIMIT)


def _pick_tile(dim, preferred, align):
    """Largest `align`-multiple tile <= preferred that divides dim (else full dim)."""
    if dim <= preferred:
        return dim
    t = (preferred // align) * align
    while t >= align:
        if dim % t == 0:
            return t
        t -= align
    return dim  # fallback: untiled along this axis


# ----------------------------------------------------------------------------
# Fused LayerNorm + matmul:  out = LN(x) @ W   (or LN(x) @ W.T when trans_w)
# ----------------------------------------------------------------------------
def _ln_matmul_kernel(x_ref, g_ref, b_ref, w_ref, o_ref, *, trans_w):
    x = x_ref[...]                                           # (tm, C) f32
    mean = jnp.mean(x, axis=-1, keepdims=True)
    var = jnp.mean(jnp.square(x - mean), axis=-1, keepdims=True)
    xn = (x - mean) * jax.lax.rsqrt(var + 1e-5)
    xn = (xn * g_ref[...] + b_ref[...]).astype(jnp.bfloat16)
    w = w_ref[...].astype(jnp.bfloat16)
    contract = ((1,), (1,)) if trans_w else ((1,), (0,))
    o = jax.lax.dot_general(xn, w, (contract, ((), ())),
                            preferred_element_type=jnp.float32)
    o_ref[...] = o.astype(o_ref.dtype)


def ln_matmul(x, g, b, w, *, trans_w=False, tm=256, tn=256):
    """x: (M, C) f32; w: (C, N) (or (N, C) if trans_w) bf16/f32 -> (M, N) f32."""
    M, C = x.shape
    N = w.shape[0] if trans_w else w.shape[1]
    tm = _pick_tile(M, tm, 8)
    tn = _pick_tile(N, tn, 128)
    grid = (M // tm, N // tn)
    w_spec = (pl.BlockSpec((tn, C), lambda i, j: (j, 0)) if trans_w
              else pl.BlockSpec((C, tn), lambda i, j: (0, j)))
    cost = pl.CostEstimate(flops=2 * M * N * C, transcendentals=M,
                           bytes_accessed=M * C * 4 + N * C * 2 + M * N * 4)
    return pl.pallas_call(
        functools.partial(_ln_matmul_kernel, trans_w=trans_w),
        out_shape=jax.ShapeDtypeStruct((M, N), jnp.float32),
        grid_spec=pltpu.PrefetchScalarGridSpec(
            num_scalar_prefetch=0,
            grid=grid,
            in_specs=[pl.BlockSpec((tm, C), lambda i, j: (i, 0)),
                      pl.BlockSpec((1, C), lambda i, j: (0, 0)),
                      pl.BlockSpec((1, C), lambda i, j: (0, 0)),
                      w_spec],
            out_specs=pl.BlockSpec((tm, tn), lambda i, j: (i, j)),
        ),
        compiler_params=_compiler_params(("parallel", "parallel")),
        cost_estimate=cost,
    )(x, g.reshape(1, C), b.reshape(1, C), w)


# ----------------------------------------------------------------------------
# Plain tiled matmul with K-reduction accumulator (used for the attn out proj)
# ----------------------------------------------------------------------------
def _matmul_kernel(x_ref, w_ref, o_ref, acc_ref):
    @pl.when(pl.program_id(2) == 0)
    def _():
        acc_ref[...] = jnp.zeros_like(acc_ref)

    acc_ref[...] += jnp.dot(x_ref[...].astype(jnp.bfloat16),
                            w_ref[...].astype(jnp.bfloat16),
                            preferred_element_type=jnp.float32)

    @pl.when(pl.program_id(2) == pl.num_programs(2) - 1)
    def _():
        o_ref[...] = acc_ref[...].astype(o_ref.dtype)


def matmul(x, w, *, tm=256, tn=256, tk=512):
    """x: (M, K); w: (K, N) -> (M, N) f32, bf16 MXU with f32 accumulation."""
    M, K = x.shape
    K2, N = w.shape
    assert K == K2
    tm = _pick_tile(M, tm, 8)
    tn = _pick_tile(N, tn, 128)
    tk = _pick_tile(K, tk, 128)
    grid = (M // tm, N // tn, K // tk)
    cost = pl.CostEstimate(flops=2 * M * N * K, transcendentals=0,
                           bytes_accessed=M * K * 4 + K * N * 2 + M * N * 4)
    return pl.pallas_call(
        _matmul_kernel,
        out_shape=jax.ShapeDtypeStruct((M, N), jnp.float32),
        grid_spec=pltpu.PrefetchScalarGridSpec(
            num_scalar_prefetch=0,
            grid=grid,
            in_specs=[pl.BlockSpec((tm, tk), lambda i, j, k: (i, k)),
                      pl.BlockSpec((tk, tn), lambda i, j, k: (k, j))],
            out_specs=pl.BlockSpec((tm, tn), lambda i, j, k: (i, j)),
            scratch_shapes=[pltpu.VMEM((tm, tn), jnp.float32)],
        ),
        compiler_params=_compiler_params(("parallel", "parallel", "arbitrary")),
        cost_estimate=cost,
    )(x, w)


# ----------------------------------------------------------------------------
# Flash-style causal attention.  q/k/v/out stay in (B, T, C=H*hd) layout so the
# HBM blocks are lane-dense and no (B,H,T,hd) transposes are materialized.
# ----------------------------------------------------------------------------
def _flash_attn_kernel(q_ref, k_ref, v_ref, o_ref, m_ref, l_ref, acc_ref,
                       *, n_heads, head_dim, scale, tq, tk):
    qi = pl.program_id(1)
    ki = pl.program_id(2)

    @pl.when(ki == 0)
    def _():
        m_ref[...] = jnp.full_like(m_ref, -1e30)
        l_ref[...] = jnp.zeros_like(l_ref)
        acc_ref[...] = jnp.zeros_like(acc_ref)

    # Skip kv tiles that lie entirely above the causal diagonal (~2x FLOP save).
    @pl.when(ki * tk <= qi * tq + (tq - 1))
    def _():
        rows = qi * tq + jax.lax.broadcasted_iota(jnp.int32, (tq, tk), 0)
        cols = ki * tk + jax.lax.broadcasted_iota(jnp.int32, (tq, tk), 1)
        causal = cols <= rows                                     # (tq, tk)
        q = q_ref[0]                                              # (tq, C) f32
        k = k_ref[0]                                              # (tk, C) f32
        v = v_ref[0]                                              # (tk, C) f32
        for h in range(n_heads):                                  # static unroll
            sl = slice(h * head_dim, (h + 1) * head_dim)
            qh = (q[:, sl] * scale).astype(jnp.bfloat16)          # (tq, hd)
            kh = k[:, sl].astype(jnp.bfloat16)                    # (tk, hd)
            vh = v[:, sl].astype(jnp.bfloat16)                    # (tk, hd)
            s = jax.lax.dot_general(qh, kh, (((1,), (1,)), ((), ())),
                                    preferred_element_type=jnp.float32)
            s = jnp.where(causal, s, -1e30)
            m_prev = m_ref[h]                                     # (tq, 1)
            m_new = jnp.maximum(m_prev, jnp.max(s, axis=-1, keepdims=True))
            p = jnp.where(causal, jnp.exp(s - m_new), 0.0)        # f32 softmax stats
            alpha = jnp.exp(m_prev - m_new)
            l_ref[h] = alpha * l_ref[h] + jnp.sum(p, axis=-1, keepdims=True)
            acc_ref[h] = alpha * acc_ref[h] + jnp.dot(
                p.astype(jnp.bfloat16), vh, preferred_element_type=jnp.float32)
            m_ref[h] = m_new

    @pl.when(ki == pl.num_programs(2) - 1)
    def _():
        outs = []
        for h in range(n_heads):
            inv = pl.reciprocal(l_ref[h], approx=True)            # EUP divide
            outs.append(acc_ref[h] * inv)                         # (tq, hd)
        # Lane-dense write: last dim is C = H * hd.
        o_ref[0] = jnp.concatenate(outs, axis=-1).astype(o_ref.dtype)


def flash_attention(q, k, v, *, n_heads, scale, tq=256, tk=256):
    """q, k, v: (B, T, C) f32 -> (B, T, C) f32, causal attention per head."""
    B, T, C = q.shape
    head_dim = C // n_heads
    tq = _pick_tile(T, tq, 8)
    tk = _pick_tile(T, tk, 8)
    grid = (B, T // tq, T // tk)
    kernel = functools.partial(_flash_attn_kernel, n_heads=n_heads,
                               head_dim=head_dim, scale=scale, tq=tq, tk=tk)
    cost = pl.CostEstimate(flops=2 * B * T * T * C,
                           transcendentals=B * n_heads * T * T // 2,
                           bytes_accessed=4 * B * T * C * 4)
    return pl.pallas_call(
        kernel,
        out_shape=jax.ShapeDtypeStruct((B, T, C), jnp.float32),
        grid_spec=pltpu.PrefetchScalarGridSpec(
            num_scalar_prefetch=0,
            grid=grid,
            in_specs=[pl.BlockSpec((1, tq, C), lambda b, qi, ki: (b, qi, 0)),
                      pl.BlockSpec((1, tk, C), lambda b, qi, ki: (b, ki, 0)),
                      pl.BlockSpec((1, tk, C), lambda b, qi, ki: (b, ki, 0))],
            out_specs=pl.BlockSpec((1, tq, C), lambda b, qi, ki: (b, qi, 0)),
            scratch_shapes=[pltpu.VMEM((n_heads, tq, 1), jnp.float32),        # running max
                            pltpu.VMEM((n_heads, tq, 1), jnp.float32),        # running sum
                            pltpu.VMEM((n_heads, tq, head_dim), jnp.float32)],  # acc
        ),
        compiler_params=_compiler_params(("parallel", "parallel", "arbitrary")),
        cost_estimate=cost,
    )(q, k, v)


# ----------------------------------------------------------------------------
# Fused LayerNorm + SwiGLU MLP:  out = (silu(LN(x)@w1) * (LN(x)@w3)) @ w2
# Grid over (row tiles, hidden tiles); hidden is the reduction axis.
# ----------------------------------------------------------------------------
def _ln_swiglu_kernel(x_ref, g_ref, b_ref, w1_ref, w3_ref, w2_ref, o_ref, acc_ref):
    hi = pl.program_id(1)

    @pl.when(hi == 0)
    def _():
        acc_ref[...] = jnp.zeros_like(acc_ref)

    x = x_ref[...]                                           # (tm, C) f32
    mean = jnp.mean(x, axis=-1, keepdims=True)
    var = jnp.mean(jnp.square(x - mean), axis=-1, keepdims=True)
    xn = ((x - mean) * jax.lax.rsqrt(var + 1e-5)) * g_ref[...] + b_ref[...]
    xb = xn.astype(jnp.bfloat16)
    h1 = jnp.dot(xb, w1_ref[...].astype(jnp.bfloat16), preferred_element_type=jnp.float32)
    h3 = jnp.dot(xb, w3_ref[...].astype(jnp.bfloat16), preferred_element_type=jnp.float32)
    h = (h1 * jax.nn.sigmoid(h1)) * h3                       # SiLU gate in f32
    acc_ref[...] += jnp.dot(h.astype(jnp.bfloat16), w2_ref[...].astype(jnp.bfloat16),
                            preferred_element_type=jnp.float32)

    @pl.when(hi == pl.num_programs(1) - 1)
    def _():
        o_ref[...] = acc_ref[...].astype(o_ref.dtype)


def ln_swiglu(x, g, b, w1, w3, w2, *, tm=256, th=512):
    """x: (M, C) f32; w1, w3: (C, H); w2: (H, C) -> (M, C) f32."""
    M, C = x.shape
    H = w1.shape[1]
    tm = _pick_tile(M, tm, 8)
    th = _pick_tile(H, th, 128)
    grid = (M // tm, H // th)
    cost = pl.CostEstimate(flops=6 * M * H * C, transcendentals=M * H,
                           bytes_accessed=M * C * 4 + 3 * H * C * 2 + M * C * 4)
    return pl.pallas_call(
        _ln_swiglu_kernel,
        out_shape=jax.ShapeDtypeStruct((M, C), jnp.float32),
        grid_spec=pltpu.PrefetchScalarGridSpec(
            num_scalar_prefetch=0,
            grid=grid,
            in_specs=[pl.BlockSpec((tm, C), lambda i, h: (i, 0)),
                      pl.BlockSpec((1, C), lambda i, h: (0, 0)),
                      pl.BlockSpec((1, C), lambda i, h: (0, 0)),
                      pl.BlockSpec((C, th), lambda i, h: (0, h)),
                      pl.BlockSpec((C, th), lambda i, h: (0, h)),
                      pl.BlockSpec((th, C), lambda i, h: (h, 0))],
            out_specs=pl.BlockSpec((tm, C), lambda i, h: (i, 0)),
            scratch_shapes=[pltpu.VMEM((tm, C), jnp.float32)],
        ),
        compiler_params=_compiler_params(("parallel", "arbitrary")),
        cost_estimate=cost,
    )(x, g.reshape(1, C), b.reshape(1, C), w1, w3, w2)


# ----------------------------------------------------------------------------
# Glue: RoPE, params, forward pass
# ----------------------------------------------------------------------------
def precompute_rope(head_dim, max_seq_len, theta=10000.0):
    inv = 1.0 / (theta ** (jnp.arange(0, head_dim, 2, dtype=jnp.float32) / head_dim))
    t = jnp.arange(max_seq_len, dtype=jnp.float32)
    ang = jnp.outer(t, inv)                 # (max_seq_len, head_dim // 2)
    return jnp.cos(ang), jnp.sin(ang)


def apply_rope(x, cos, sin):
    # x: (B, T, H, hd); interleaved (real, imag) pairs along the last dim,
    # matching torch.view_as_complex semantics.  No HBM transposes.
    B, T, H, hd = x.shape
    xr = x.reshape(B, T, H, hd // 2, 2)
    xe, xo = xr[..., 0], xr[..., 1]
    c = cos[None, :, None, :]
    s = sin[None, :, None, :]
    re = xe * c - xo * s
    im = xe * s + xo * c
    return jnp.stack([re, im], axis=-1).reshape(B, T, H, hd)


def init_params(key, vocab, dim, n_layers, hidden):
    std = 0.02
    keys = jax.random.split(key, 1 + n_layers)
    params = {
        "tok_emb": (std * jax.random.normal(keys[0], (vocab, dim), jnp.float32)
                    ).astype(jnp.bfloat16),
        "lnf_g": jnp.ones((dim,), jnp.float32),
        "lnf_b": jnp.zeros((dim,), jnp.float32),
        "blocks": [],
    }
    for li in range(n_layers):
        ks = jax.random.split(keys[1 + li], 7)
        wq = std * jax.random.normal(ks[0], (dim, dim), jnp.float32)
        wk = std * jax.random.normal(ks[1], (dim, dim), jnp.float32)
        wv = std * jax.random.normal(ks[2], (dim, dim), jnp.float32)
        blk = {
            "ln1_g": jnp.ones((dim,), jnp.float32),
            "ln1_b": jnp.zeros((dim,), jnp.float32),
            "ln2_g": jnp.ones((dim,), jnp.float32),
            "ln2_b": jnp.zeros((dim,), jnp.float32),
            # Fused QKV weight hoisted to init time (no per-call concat in HBM).
            "wqkv": jnp.concatenate([wq, wk, wv], axis=1).astype(jnp.bfloat16),
            "wo": (std * jax.random.normal(ks[3], (dim, dim), jnp.float32)).astype(jnp.bfloat16),
            "w1": (std * jax.random.normal(ks[4], (dim, hidden), jnp.float32)).astype(jnp.bfloat16),
            "w3": (std * jax.random.normal(ks[5], (dim, hidden), jnp.float32)).astype(jnp.bfloat16),
            "w2": (std * jax.random.normal(ks[6], (hidden, dim), jnp.float32)).astype(jnp.bfloat16),
        }
        params["blocks"].append(blk)
    return params


def gpt_forward(idx, params, cos, sin, *, n_heads):
    B, T = idx.shape
    emb = params["tok_emb"]                                   # (V, C), tied head weight
    x = jnp.take(emb, idx, axis=0).astype(jnp.float32)        # (B, T, C) f32 residual stream
    C = x.shape[-1]
    hd = C // n_heads
    scale = hd ** (-0.5)
    cos_t, sin_t = cos[:T], sin[:T]

    for blk in params["blocks"]:
        x2d = x.reshape(B * T, C)
        # --- attention sub-block: fused LN1 + QKV projection ---
        qkv = ln_matmul(x2d, blk["ln1_g"], blk["ln1_b"], blk["wqkv"])   # (B*T, 3C)
        q, k, v = jnp.split(qkv, 3, axis=-1)
        q = apply_rope(q.reshape(B, T, n_heads, hd), cos_t, sin_t).reshape(B, T, C)
        k = apply_rope(k.reshape(B, T, n_heads, hd), cos_t, sin_t).reshape(B, T, C)
        v = v.reshape(B, T, C)
        o = flash_attention(q, k, v, n_heads=n_heads, scale=scale)      # (B, T, C)
        x = x + matmul(o.reshape(B * T, C), blk["wo"]).reshape(B, T, C)

        # --- MLP sub-block: fused LN2 + SwiGLU ---
        mlp = ln_swiglu(x.reshape(B * T, C), blk["ln2_g"], blk["ln2_b"],
                        blk["w1"], blk["w3"], blk["w2"])
        x = x + mlp.reshape(B, T, C)

    # Final LN fused with the tied-embedding logits head; contracts against the
    # embedding's C axis directly (no emb.T materialization in HBM).
    logits = ln_matmul(x.reshape(B * T, C), params["lnf_g"], params["lnf_b"],
                       emb, trans_w=True)
    return logits.reshape(B, T, emb.shape[0])


# TODO(synk): `generate` (multinomial sampling loop) and the cross-entropy loss
# branch (targets is not None) are host-side control flow, not kernel work.

if __name__ == "__main__":
    vocab_size = 128
    dim = 64
    n_layers = 2
    n_heads = 4
    max_seq_len = 16
    hidden = int(dim * 4.0)
    B, T = 2, 8

    key = jax.random.PRNGKey(0)
    kp, ki = jax.random.split(key)
    params = init_params(kp, vocab_size, dim, n_layers, hidden)
    cos, sin = precompute_rope(dim // n_heads, max_seq_len)
    idx = jax.random.randint(ki, (B, T), 0, vocab_size, dtype=jnp.int32)

    fwd = jax.jit(functools.partial(gpt_forward, n_heads=n_heads))
    logits = fwd(idx, params, cos, sin)
    jax.block_until_ready(logits)

    assert logits.shape == (B, T, vocab_size), logits.shape
    assert bool(jnp.all(jnp.isfinite(logits)))
    print("KERNEL_OK")
</pallas_src>

<mosaic_0001>
module attributes {stable_mosaic.version = 11 : i64} {
  func.func @_ln_matmul_kernel(%arg0: i32, %arg1: i32, %arg2: memref<16x64xf32, #tpu.memory_space<vmem>>, %arg3: memref<1x64xf32, #tpu.memory_space<vmem>>, %arg4: memref<1x64xf32, #tpu.memory_space<vmem>>, %arg5: memref<64x192xbf16, #tpu.memory_space<vmem>>, %arg6: memref<16x192xf32, #tpu.memory_space<vmem>>) attributes {dimension_semantics = [#tpu.dimension_semantics<parallel>, #tpu.dimension_semantics<parallel>], iteration_bounds = array<i64: 1, 1>, scalar_prefetch = 0 : i64, scratch_operands = 0 : i64, tpu.core_type = #tpu.core_type<tc>, window_params = [{transform_indices = @transform_0, window_bounds = array<i64: 16, 64>}, {pipeline_mode = #tpu.pipeline_mode<synchronous>, transform_indices = @transform_1, window_bounds = array<i64: 1, 64>}, {pipeline_mode = #tpu.pipeline_mode<synchronous>, transform_indices = @transform_2, window_bounds = array<i64: 1, 64>}, {transform_indices = @transform_3, window_bounds = array<i64: 64, 192>}, {transform_indices = @transform_4, window_bounds = array<i64: 16, 192>}]} {
    %c0 = arith.constant 0 : index
    %c0_0 = arith.constant 0 : index
    %0 = vector.load %arg2[%c0, %c0_0] : memref<16x64xf32, #tpu.memory_space<vmem>>, vector<16x64xf32>
    %cst = arith.constant dense<0.000000e+00> : vector<16xf32>
    %1 = vector.multi_reduction <add>, %0, %cst [1] : vector<16x64xf32> to vector<16xf32>
    %2 = vector.shape_cast %1 : vector<16xf32> to vector<16x1xf32>
    %cst_1 = arith.constant 6.400000e+01 : f32
    %3 = vector.broadcast %cst_1 : f32 to vector<16x1xf32>
    %4 = arith.divf %2, %3 : vector<16x1xf32>
    %5 = vector.broadcast %4 : vector<16x1xf32> to vector<16x64xf32>
    %6 = arith.subf %0, %5 : vector<16x64xf32>
    %7 = arith.mulf %6, %6 : vector<16x64xf32>
    %cst_2 = arith.constant dense<0.000000e+00> : vector<16xf32>
    %8 = vector.multi_reduction <add>, %7, %cst_2 [1] : vector<16x64xf32> to vector<16xf32>
    %9 = vector.shape_cast %8 : vector<16xf32> to vector<16x1xf32>
    %cst_3 = arith.constant 6.400000e+01 : f32
    %10 = vector.broadcast %cst_3 : f32 to vector<16x1xf32>
    %11 = arith.divf %9, %10 : vector<16x1xf32>
    %12 = vector.broadcast %4 : vector<16x1xf32> to vector<16x64xf32>
    %13 = arith.subf %0, %12 : vector<16x64xf32>
    %cst_4 = arith.constant 9.99999974E-6 : f32
    %14 = vector.broadcast %cst_4 : f32 to vector<16x1xf32>
    %15 = arith.addf %11, %14 : vector<16x1xf32>
    %16 = math.rsqrt %15 : vector<16x1xf32>
    %17 = vector.broadcast %16 : vector<16x1xf32> to vector<16x64xf32>
    %18 = arith.mulf %13, %17 : vector<16x64xf32>
    %c0_5 = arith.constant 0 : index
    %c0_6 = arith.constant 0 : index
    %19 = vector.load %arg3[%c0_5, %c0_6] : memref<1x64xf32, #tpu.memory_space<vmem>>, vector<1x64xf32>
    %20 = vector.broadcast %19 : vector<1x64xf32> to vector<16x64xf32>
    %21 = arith.mulf %18, %20 : vector<16x64xf32>
    %c0_7 = arith.constant 0 : index
    %c0_8 = arith.constant 0 : index
    %22 = vector.load %arg4[%c0_7, %c0_8] : memref<1x64xf32, #tpu.memory_space<vmem>>, vector<1x64xf32>
    %23 = vector.broadcast %22 : vector<1x64xf32> to vector<16x64xf32>
    %24 = arith.addf %21, %23 : vector<16x64xf32>
    %25 = arith.truncf %24 : vector<16x64xf32> to vector<16x64xbf16>
    %c0_9 = arith.constant 0 : index
    %c0_10 = arith.constant 0 : index
    %26 = vector.load %arg5[%c0_9, %c0_10] : memref<64x192xbf16, #tpu.memory_space<vmem>>, vector<64x192xbf16>
    %cst_11 = arith.constant dense<0.000000e+00> : vector<16x192xf32>
    %27 = tpu.matmul %25, %26, %cst_11 {dimension_numbers = #tpu.dot_dimension_numbers<[1], [0], [0], [1], [0, 0, 1, 1], [], []>} : vector<16x64xbf16>, vector<64x192xbf16>, vector<16x192xf32> -> vector<16x192xf32>
    %c0_12 = arith.constant 0 : index
    %c0_13 = arith.constant 0 : index
    %28 = vector.load %arg6[%c0_12, %c0_13] : memref<16x192xf32, #tpu.memory_space<vmem>>, vector<16x192xf32>
    tpu.vector_store %arg6[%c0_12, %c0_13], %27 {strides = array<i32>} : memref<16x192xf32, #tpu.memory_space<vmem>>, vector<16x192xf32>,
    return
  }
  func.func @transform_0(%arg0: i32, %arg1: i32) -> (i32, i32) {
    %c0_i32 = arith.constant 0 : i32
    %c0_i32_0 = arith.constant 0 : i32
    return %arg0, %c0_i32 : i32, i32
  }
  func.func @transform_1(%arg0: i32, %arg1: i32) -> (i32, i32) {
    %c0_i32 = arith.constant 0 : i32
    %c0_i32_0 = arith.constant 0 : i32
    %c0_i32_1 = arith.constant 0 : i32
    return %c0_i32, %c0_i32_0 : i32, i32
  }
  func.func @transform_2(%arg0: i32, %arg1: i32) -> (i32, i32) {
    %c0_i32 = arith.constant 0 : i32
    %c0_i32_0 = arith.constant 0 : i32
    %c0_i32_1 = arith.constant 0 : i32
    return %c0_i32, %c0_i32_0 : i32, i32
  }
  func.func @transform_3(%arg0: i32, %arg1: i32) -> (i32, i32) {
    %c0_i32 = arith.constant 0 : i32
    %c0_i32_0 = arith.constant 0 : i32
    return %c0_i32, %arg1 : i32, i32
  }
  func.func @transform_4(%arg0: i32, %arg1: i32) -> (i32, i32) {
    %c0_i32 = arith.constant 0 : i32
    return %arg0, %arg1 : i32, i32
  }
}

module attributes {stable_mosaic.version = 11 : i64} {
  func.func @_matmul_kernel(%arg0: i32, %arg1: i32, %arg2: i32, %arg3: memref<16x64xf32, #tpu.memory_space<vmem>>, %arg4: memref<64x64xbf16, #tpu.memory_space<vmem>>, %arg5: memref<16x64xf32, #tpu.memory_space<vmem>>, %arg6: memref<16x64xf32, #tpu.memory_space<vmem>>) attributes {dimension_semantics = [#tpu.dimension_semantics<parallel>, #tpu.dimension_semantics<parallel>, #tpu.dimension_semantics<arbitrary>], iteration_bounds = array<i64: 1, 1, 1>, scalar_prefetch = 0 : i64, scratch_operands = 1 : i64, tpu.core_type = #tpu.core_type<tc>, window_params = [{transform_indices = @transform_0, window_bounds = array<i64: 16, 64>}, {transform_indices = @transform_1, window_bounds = array<i64: 64, 64>}, {transform_indices = @transform_2, window_bounds = array<i64: 16, 64>}]} {
    %c0_i32 = arith.constant 0 : i32
    %0 = arith.cmpi eq, %arg2, %c0_i32 : i32
    %1 = arith.extui %0 : i1 to i32
    %c0_i32_0 = arith.constant 0 : i32
    %2 = arith.cmpi ne, %1, %c0_i32_0 : i32
    scf.if %2 {
      %cst_10 = arith.constant 0.000000e+00 : f32
      %13 = vector.broadcast %cst_10 : f32 to vector<16x64xf32>
      %c0_11 = arith.constant 0 : index
      %c0_12 = arith.constant 0 : index
      %14 = vector.load %arg6[%c0_11, %c0_12] : memref<16x64xf32, #tpu.memory_space<vmem>>, vector<16x64xf32>
      tpu.vector_store %arg6[%c0_11, %c0_12], %13 {strides = array<i32>} : memref<16x64xf32, #tpu.memory_space<vmem>>, vector<16x64xf32>,
    } else {
    }
    %c0 = arith.constant 0 : index
    %c0_1 = arith.constant 0 : index
    %3 = vector.load %arg6[%c0, %c0_1] : memref<16x64xf32, #tpu.memory_space<vmem>>, vector<16x64xf32>
    %c0_2 = arith.constant 0 : index
    %c0_3 = arith.constant 0 : index
    %4 = vector.load %arg3[%c0_2, %c0_3] : memref<16x64xf32, #tpu.memory_space<vmem>>, vector<16x64xf32>
    %5 = arith.truncf %4 : vector<16x64xf32> to vector<16x64xbf16>
    %c0_4 = arith.constant 0 : index
    %c0_5 = arith.constant 0 : index
    %6 = vector.load %arg4[%c0_4, %c0_5] : memref<64x64xbf16, #tpu.memory_space<vmem>>, vector<64x64xbf16>
    %cst = arith.constant dense<0.000000e+00> : vector<16x64xf32>
    %7 = tpu.matmul %5, %6, %cst {dimension_numbers = #tpu.dot_dimension_numbers<[1], [0], [0], [1], [0, 0, 1, 1], [], []>} : vector<16x64xbf16>, vector<64x64xbf16>, vector<16x64xf32> -> vector<16x64xf32>
    %8 = arith.addf %3, %7 : vector<16x64xf32>
    %c0_6 = arith.constant 0 : index
    %c0_7 = arith.constant 0 : index
    %9 = vector.load %arg6[%c0_6, %c0_7] : memref<16x64xf32, #tpu.memory_space<vmem>>, vector<16x64xf32>
    tpu.vector_store %arg6[%c0_6, %c0_7], %8 {strides = array<i32>} : memref<16x64xf32, #tpu.memory_space<vmem>>, vector<16x64xf32>,
    %c0_i32_8 = arith.constant 0 : i32
    %10 = arith.cmpi eq, %arg2, %c0_i32_8 : i32
    %11 = arith.extui %10 : i1 to i32
    %c0_i32_9 = arith.constant 0 : i32
    %12 = arith.cmpi ne, %11, %c0_i32_9 : i32
    scf.if %12 {
      %c0_10 = arith.constant 0 : index
      %c0_11 = arith.constant 0 : index
      %13 = vector.load %arg6[%c0_10, %c0_11] : memref<16x64xf32, #tpu.memory_space<vmem>>, vector<16x64xf32>
      %c0_12 = arith.constant 0 : index
      %c0_13 = arith.constant 0 : index
      %14 = vector.load %arg5[%c0_12, %c0_13] : memref<16x64xf32, #tpu.memory_space<vmem>>, vector<16x64xf32>
      tpu.vector_store %arg5[%c0_12, %c0_13], %13 {strides = array<i32>} : memref<16x64xf32, #tpu.memory_space<vmem>>, vector<16x64xf32>,
    } else {
    }
    return
  }
  func.func @transform_0(%arg0: i32, %arg1: i32, %arg2: i32) -> (i32, i32) {
    %c0_i32 = arith.constant 0 : i32
    return %arg0, %arg2 : i32, i32
  }
  func.func @transform_1(%arg0: i32, %arg1: i32, %arg2: i32) -> (i32, i32) {
    %c0_i32 = arith.constant 0 : i32
    return %arg2, %arg1 : i32, i32
  }
  func.func @transform_2(%arg0: i32, %arg1: i32, %arg2: i32) -> (i32, i32) {
    %c0_i32 = arith.constant 0 : i32
    return %arg0, %arg1 : i32, i32
  }
}

module attributes {stable_mosaic.version = 11 : i64} {
  func.func @_flash_attn_kernel(%arg0: i32, %arg1: i32, %arg2: i32, %arg3: memref<1x8x64xf32, #tpu.memory_space<vmem>>, %arg4: memref<1x8x64xf32, #tpu.memory_space<vmem>>, %arg5: memref<1x8x64xf32, #tpu.memory_space<vmem>>, %arg6: memref<1x8x64xf32, #tpu.memory_space<vmem>>, %arg7: memref<4x8x1xf32, #tpu.memory_space<vmem>>, %arg8: memref<4x8x1xf32, #tpu.memory_space<vmem>>, %arg9: memref<4x8x16xf32, #tpu.memory_space<vmem>>) attributes {dimension_semantics = [#tpu.dimension_semantics<parallel>, #tpu.dimension_semantics<parallel>, #tpu.dimension_semantics<arbitrary>], iteration_bounds = array<i64: 2, 1, 1>, scalar_prefetch = 0 : i64, scratch_operands = 3 : i64, tpu.core_type = #tpu.core_type<tc>, window_params = [{transform_indices = @transform_0, window_bounds = array<i64: 1, 8, 64>}, {transform_indices = @transform_1, window_bounds = array<i64: 1, 8, 64>}, {transform_indices = @transform_2, window_bounds = array<i64: 1, 8, 64>}, {transform_indices = @transform_3, window_bounds = array<i64: 1, 8, 64>}]} {
    %c0_i32 = arith.constant 0 : i32
    %0 = arith.cmpi eq, %arg2, %c0_i32 : i32
    %1 = arith.extui %0 : i1 to i32
    %c0_i32_0 = arith.constant 0 : i32
    %2 = arith.cmpi ne, %1, %c0_i32_0 : i32
    scf.if %2 {
      %cst = arith.constant -1.000000e+30 : f32
      %12 = vector.broadcast %cst : f32 to vector<4x8x1xf32>
      %c0 = arith.constant 0 : index
      %c0_5 = arith.constant 0 : index
      %c0_6 = arith.constant 0 : index
      %13 = vector.load %arg7[%c0, %c0_5, %c0_6] : memref<4x8x1xf32, #tpu.memory_space<vmem>>, vector<4x8x1xf32>
      tpu.vector_store %arg7[%c0, %c0_5, %c0_6], %12 {strides = array<i32>} : memref<4x8x1xf32, #tpu.memory_space<vmem>>, vector<4x8x1xf32>,
      %cst_7 = arith.constant 0.000000e+00 : f32
      %14 = vector.broadcast %cst_7 : f32 to vector<4x8x1xf32>
      %c0_8 = arith.constant 0 : index
      %c0_9 = arith.constant 0 : index
      %c0_10 = arith.constant 0 : index
      %15 = vector.load %arg8[%c0_8, %c0_9, %c0_10] : memref<4x8x1xf32, #tpu.memory_space<vmem>>, vector<4x8x1xf32>
      tpu.vector_store %arg8[%c0_8, %c0_9, %c0_10], %14 {strides = array<i32>} : memref<4x8x1xf32, #tpu.memory_space<vmem>>, vector<4x8x1xf32>,
      %cst_11 = arith.constant 0.000000e+00 : f32
      %16 = vector.broadcast %cst_11 : f32 to vector<4x8x16xf32>
      %c0_12 = arith.constant 0 : index
      %c0_13 = arith.constant 0 : index
      %c0_14 = arith.constant 0 : index
      %17 = vector.load %arg9[%c0_12, %c0_13, %c0_14] : memref<4x8x16xf32, #tpu.memory_space<vmem>>, vector<4x8x16xf32>
      tpu.vector_store %arg9[%c0_12, %c0_13, %c0_14], %16 {strides = array<i32>} : memref<4x8x16xf32, #tpu.memory_space<vmem>>, vector<4x8x16xf32>,
    } else {
    }
    %c8_i32 = arith.constant 8 : i32
    %3 = arith.muli %arg2, %c8_i32 : i32
    %c8_i32_1 = arith.constant 8 : i32
    %4 = arith.muli %arg1, %c8_i32_1 : i32
    %c7_i32 = arith.constant 7 : i32
    %5 = arith.addi %4, %c7_i32 : i32
    %6 = arith.cmpi sle, %3, %5 : i32
    %7 = arith.extui %6 : i1 to i32
    %c0_i32_2 = arith.constant 0 : i32
    %8 = arith.cmpi ne, %7, %c0_i32_2 : i32
    scf.if %8 {
      %c8_i32_5 = arith.constant 8 : i32
      %12 = arith.muli %arg1, %c8_i32_5 : i32
      %13 = tpu.iota {dimensions = array<i32: 0>} : vector<8x8xi32>
      %14 = vector.broadcast %12 : i32 to vector<8x8xi32>
      %15 = arith.addi %14, %13 : vector<8x8xi32>
      %c8_i32_6 = arith.constant 8 : i32
      %16 = arith.muli %arg2, %c8_i32_6 : i32
      %17 = tpu.iota {dimensions = array<i32: 1>} : vector<8x8xi32>
      %18 = vector.broadcast %16 : i32 to vector<8x8xi32>
      %19 = arith.addi %18, %17 : vector<8x8xi32>
      %20 = arith.cmpi sle, %19, %15 : vector<8x8xi32>
      %c0 = arith.constant 0 : index
      %c0_7 = arith.constant 0 : index
      %c0_8 = arith.constant 0 : index
      %21 = vector.load %arg3[%c0, %c0_7, %c0_8] : memref<1x8x64xf32, #tpu.memory_space<vmem>>, vector<1x8x64xf32>
      %22 = vector.shape_cast %21 : vector<1x8x64xf32> to vector<8x64xf32>
      %c0_9 = arith.constant 0 : index
      %c0_10 = arith.constant 0 : index
      %c0_11 = arith.constant 0 : index
      %23 = vector.load %arg4[%c0_9, %c0_10, %c0_11] : memref<1x8x64xf32, #tpu.memory_space<vmem>>, vector<1x8x64xf32>
      %24 = vector.shape_cast %23 : vector<1x8x64xf32> to vector<8x64xf32>
      %c0_12 = arith.constant 0 : index
      %c0_13 = arith.constant 0 : index
      %c0_14 = arith.constant 0 : index
      %25 = vector.load %arg5[%c0_12, %c0_13, %c0_14] : memref<1x8x64xf32, #tpu.memory_space<vmem>>, vector<1x8x64xf32>
      %26 = vector.shape_cast %25 : vector<1x8x64xf32> to vector<8x64xf32>
      %27 = vector.extract_strided_slice %22 {offsets = [0, 0], sizes = [8, 16], strides = [1, 1]} : vector<8x64xf32> to vector<8x16xf32>
      %cst = arith.constant 2.500000e-01 : f32
      %28 = vector.broadcast %cst : f32 to vector<8x16xf32>
      %29 = arith.mulf %27, %28 : vector<8x16xf32>
      %30 = arith.truncf %29 : vector<8x16xf32> to vector<8x16xbf16>
      %31 = vector.extract_strided_slice %24 {offsets = [0, 0], sizes = [8, 16], strides = [1, 1]} : vector<8x64xf32> to vector<8x16xf32>
      %32 = arith.truncf %31 : vector<8x16xf32> to vector<8x16xbf16>
      %33 = vector.extract_strided_slice %26 {offsets = [0, 0], sizes = [8, 16], strides = [1, 1]} : vector<8x64xf32> to vector<8x16xf32>
      %34 = arith.truncf %33 : vector<8x16xf32> to vector<8x16xbf16>
      %cst_15 = arith.constant dense<0.000000e+00> : vector<8x8xf32>
      %35 = tpu.matmul %30, %32, %cst_15 {dimension_numbers = #tpu.dot_dimension_numbers<[1], [1], [0], [0], [0, 0, 1, 0], [], []>} : vector<8x16xbf16>, vector<8x16xbf16>, vector<8x8xf32> -> vector<8x8xf32>
      %cst_16 = arith.constant -1.000000e+30 : f32
      %36 = vector.broadcast %cst_16 : f32 to vector<8x8xf32>
      %37 = arith.select %20, %35, %36 : vector<8x8xi1>, vector<8x8xf32>
      %c0_17 = arith.constant 0 : index
      %c0_18 = arith.constant 0 : index
      %c0_19 = arith.constant 0 : index
      %38 = vector.load %arg7[%c0_17, %c0_18, %c0_19] : memref<4x8x1xf32, #tpu.memory_space<vmem>>, vector<1x8x1xf32>
      %39 = vector.shape_cast %38 : vector<1x8x1xf32> to vector<8x1xf32>
      %cst_20 = arith.constant dense<0xFF800000> : vector<8xf32>
      %40 = vector.multi_reduction <maximumf>, %37, %cst_20 [1] : vector<8x8xf32> to vector<8xf32>
      %41 = vector.shape_cast %40 : vector<8xf32> to vector<8x1xf32>
      %42 = arith.maximumf %39, %41 : vector<8x1xf32>
      %43 = vector.broadcast %42 : vector<8x1xf32> to vector<8x8xf32>
      %44 = arith.subf %37, %43 : vector<8x8xf32>
      %45 = math.exp %44 : vector<8x8xf32>
      %cst_21 = arith.constant 0.000000e+00 : f32
      %46 = vector.broadcast %cst_21 : f32 to vector<8x8xf32>
      %47 = arith.select %20, %45, %46 : vector<8x8xi1>, vector<8x8xf32>
      %48 = arith.subf %39, %42 : vector<8x1xf32>
      %49 = math.exp %48 : vector<8x1xf32>
      %c0_22 = arith.constant 0 : index
      %c0_23 = arith.constant 0 : index
      %c0_24 = arith.constant 0 : index
      %50 = vector.load %arg8[%c0_22, %c0_23, %c0_24] : memref<4x8x1xf32, #tpu.memory_space<vmem>>, vector<1x8x1xf32>
      %51 = vector.shape_cast %50 : vector<1x8x1xf32> to vector<8x1xf32>
      %52 = arith.mulf %49, %51 : vector<8x1xf32>
      %cst_25 = arith.constant dense<0.000000e+00> : vector<8xf32>
      %53 = vector.multi_reduction <add>, %47, %cst_25 [1] : vector<8x8xf32> to vector<8xf32>
      %54 = vector.shape_cast %53 : vector<8xf32> to vector<8x1xf32>
      %55 = arith.addf %52, %54 : vector<8x1xf32>
      %c0_26 = arith.constant 0 : index
      %c0_27 = arith.constant 0 : index
      %c0_28 = arith.constant 0 : index
      %56 = vector.load %arg8[%c0_26, %c0_27, %c0_28] : memref<4x8x1xf32, #tpu.memory_space<vmem>>, vector<1x8x1xf32>
      %57 = vector.shape_cast %56 : vector<1x8x1xf32> to vector<8x1xf32>
      %58 = vector.shape_cast %55 : vector<8x1xf32> to vector<1x8x1xf32>
      tpu.vector_store %arg8[%c0_26, %c0_27, %c0_28], %58 {strides = array<i32>} : memref<4x8x1xf32, #tpu.memory_space<vmem>>, vector<1x8x1xf32>,
      %c0_29 = arith.constant 0 : index
      %c0_30 = arith.constant 0 : index
      %c0_31 = arith.constant 0 : index
      %59 = vector.load %arg9[%c0_29, %c0_30, %c0_31] : memref<4x8x16xf32, #tpu.memory_space<vmem>>, vector<1x8x16xf32>
      %60 = vector.shape_cast %59 : vector<1x8x16xf32> to vector<8x16xf32>
      %61 = vector.broadcast %49 : vector<8x1xf32> to vector<8x16xf32>
      %62 = arith.mulf %61, %60 : vector<8x16xf32>
      %63 = arith.truncf %47 : vector<8x8xf32> to vector<8x8xbf16>
      %cst_32 = arith.constant dense<0.000000e+00> : vector<8x16xf32>
      %64 = tpu.matmul %63, %34, %cst_32 {dimension_numbers = #tpu.dot_dimension_numbers<[1], [0], [0], [1], [0, 0, 1, 1], [], []>} : vector<8x8xbf16>, vector<8x16xbf16>, vector<8x16xf32> -> vector<8x16xf32>
      %65 = arith.addf %62, %64 : vector<8x16xf32>
      %c0_33 = arith.constant 0 : index
      %c0_34 = arith.constant 0 : index
      %c0_35 = arith.constant 0 : index
      %66 = vector.load %arg9[%c0_33, %c0_34, %c0_35] : memref<4x8x16xf32, #tpu.memory_space<vmem>>, vector<1x8x16xf32>
      %67 = vector.shape_cast %66 : vector<1x8x16xf32> to vector<8x16xf32>
      %68 = vector.shape_cast %65 : vector<8x16xf32> to vector<1x8x16xf32>
      tpu.vector_store %arg9[%c0_33, %c0_34, %c0_35], %68 {strides = array<i32>} : memref<4x8x16xf32, #tpu.memory_space<vmem>>, vector<1x8x16xf32>,
      %c0_36 = arith.constant 0 : index
      %c0_37 = arith.constant 0 : index
      %c0_38 = arith.constant 0 : index
      %69 = vector.load %arg7[%c0_36, %c0_37, %c0_38] : memref<4x8x1xf32, #tpu.memory_space<vmem>>, vector<1x8x1xf32>
      %70 = vector.shape_cast %69 : vector<1x8x1xf32> to vector<8x1xf32>
      %71 = vector.shape_cast %42 : vector<8x1xf32> to vector<1x8x1xf32>
      tpu.vector_store %arg7[%c0_36, %c0_37, %c0_38], %71 {strides = array<i32>} : memref<4x8x1xf32, #tpu.memory_space<vmem>>, vector<1x8x1xf32>,
      %72 = vector.extract_strided_slice %22 {offsets = [0, 16], sizes = [8, 16], strides = [1, 1]} : vector<8x64xf32> to vector<8x16xf32>
      %cst_39 = arith.constant 2.500000e-01 : f32
      %73 = vector.broadcast %cst_39 : f32 to vector<8x16xf32>
      %74 = arith.mulf %72, %73 : vector<8x16xf32>
      %75 = arith.truncf %74 : vector<8x16xf32> to vector<8x16xbf16>
      %76 = vector.extract_strided_slice %24 {offsets = [0, 16], sizes = [8, 16], strides = [1, 1]} : vector<8x64xf32> to vector<8x16xf32>
      %77 = arith.truncf %76 : vector<8x16xf32> to vector<8x16xbf16>
      %78 = vector.extract_strided_slice %26 {offsets = [0, 16], sizes = [8, 16], strides = [1, 1]} : vector<8x64xf32> to vector<8x16xf32>
      %79 = arith.truncf %78 : vector<8x16xf32> to vector<8x16xbf16>
      %cst_40 = arith.constant dense<0.000000e+00> : vector<8x8xf32>
      %80 = tpu.matmul %75, %77, %cst_40 {dimension_numbers = #tpu.dot_dimension_numbers<[1], [1], [0], [0], [0, 0, 1, 0], [], []>} : vector<8x16xbf16>, vector<8x16xbf16>, vector<8x8xf32> -> vector<8x8xf32>
      %cst_41 = arith.constant -1.000000e+30 : f32
      %81 = vector.broadcast %cst_41 : f32 to vector<8x8xf32>
      %82 = arith.select %20, %80, %81 : vector<8x8xi1>, vector<8x8xf32>
      %c1 = arith.constant 1 : index
      %c0_42 = arith.constant 0 : index
      %c0_43 = arith.constant 0 : index
      %83 = vector.load %arg7[%c1, %c0_42, %c0_43] : memref<4x8x1xf32, #tpu.memory_space<vmem>>, vector<1x8x1xf32>
      %84 = vector.shape_cast %83 : vector<1x8x1xf32> to vector<8x1xf32>
      %cst_44 = arith.constant dense<0xFF800000> : vector<8xf32>
      %85 = vector.multi_reduction <maximumf>, %82, %cst_44 [1] : vector<8x8xf32> to vector<8xf32>
      %86 = vector.shape_cast %85 : vector<8xf32> to vector<8x1xf32>
      %87 = arith.maximumf %84, %86 : vector<8x1xf32>
      %88 = vector.broadcast %87 : vector<8x1xf32> to vector<8x8xf32>
      %89 = arith.subf %82, %88 : vector<8x8xf32>
      %90 = math.exp %89 : vector<8x8xf32>
      %cst_45 = arith.constant 0.000000e+00 : f32
      %91 = vector.broadcast %cst_45 : f32 to vector<8x8xf32>
      %92 = arith.select %20, %90, %91 : vector<8x8xi1>, vector<8x8xf32>
      %93 = arith.subf %84, %87 : vector<8x1xf32>
      %94 = math.exp %93 : vector<8x1xf32>
      %c1_46 = arith.constant 1 : index
      %c0_47 = arith.constant 0 : index
      %c0_48 = arith.constant 0 : index
      %95 = vector.load %arg8[%c1_46, %c0_47, %c0_48] : memref<4x8x1xf32, #tpu.memory_space<vmem>>, vector<1x8x1xf32>
      %96 = vector.shape_cast %95 : vector<1x8x1xf32> to vector<8x1xf32>
      %97 = arith.mulf %94, %96 : vector<8x1xf32>
      %cst_49 = arith.constant dense<0.000000e+00> : vector<8xf32>
      %98 = vector.multi_reduction <add>, %92, %cst_49 [1] : vector<8x8xf32> to vector<8xf32>
      %99 = vector.shape_cast %98 : vector<8xf32> to vector<8x1xf32>
      %100 = arith.addf %97, %99 : vector<8x1xf32>
      %c1_50 = arith.constant 1 : index
      %c0_51 = arith.constant 0 : index
      %c0_52 = arith.constant 0 : index
      %101 = vector.load %arg8[%c1_50, %c0_51, %c0_52] : memref<4x8x1xf32, #tpu.memory_space<vmem>>, vector<1x8x1xf32>
      %102 = vector.shape_cast %101 : vector<1x8x1xf32> to vector<8x1xf32>
      %103 = vector.shape_cast %100 : vector<8x1xf32> to vector<1x8x1xf32>
      tpu.vector_store %arg8[%c1_50, %c0_51, %c0_52], %103 {strides = array<i32>} : memref<4x8x1xf32, #tpu.memory_space<vmem>>, vector<1x8x1xf32>,
      %c1_53 = arith.constant 1 : index
      %c0_54 = arith.constant 0 : index
      %c0_55 = arith.constant 0 : index
      %104 = vector.load %arg9[%c1_53, %c0_54, %c0_55] : memref<4x8x16xf32, #tpu.memory_space<vmem>>, vector<1x8x16xf32>
      %105 = vector.shape_cast %104 : vector<1x8x16xf32> to vector<8x16xf32>
      %106 = vector.broadcast %94 : vector<8x1xf32> to vector<8x16xf32>
      %107 = arith.mulf %106, %105 : vector<8x16xf32>
      %108 = arith.truncf %92 : vector<8x8xf32> to vector<8x8xbf16>
      %cst_56 = arith.constant dense<0.000000e+00> : vector<8x16xf32>
      %109 = tpu.matmul %108, %79, %cst_56 {dimension_numbers = #tpu.dot_dimension_numbers<[1], [0], [0], [1], [0, 0, 1, 1], [], []>} : vector<8x8xbf16>, vector<8x16xbf16>, vector<8x16xf32> -> vector<8x16xf32>
      %110 = arith.addf %107, %109 : vector<8x16xf32>
      %c1_57 = arith.constant 1 : index
      %c0_58 = arith.constant 0 : index
      %c0_59 = arith.constant 0 : index
      %111 = vector.load %arg9[%c1_57, %c0_58, %c0_59] : memref<4x8x16xf32, #tpu.memory_space<vmem>>, vector<1x8x16xf32>
      %112 = vector.shape_cast %111 : vector<1x8x16xf32> to vector<8x16xf32>
      %113 = vector.shape_cast %110 : vector<8x16xf32> to vector<1x8x16xf32>
      tpu.vector_store %arg9[%c1_57, %c0_58, %c0_59], %113 {strides = array<i32>} : memref<4x8x16xf32, #tpu.memory_space<vmem>>, vector<1x8x16xf32>,
      %c1_60 = arith.constant 1 : index
      %c0_61 = arith.constant 0 : index
      %c0_62 = arith.constant 0 : index
      %114 = vector.load %arg7[%c1_60, %c0_61, %c0_62] : memref<4x8x1xf32, #tpu.memory_space<vmem>>, vector<1x8x1xf32>
      %115 = vector.shape_cast %114 : vector<1x8x1xf32> to vector<8x1xf32>
      %116 = vector.shape_cast %87 : vector<8x1xf32> to vector<1x8x1xf32>
      tpu.vector_store %arg7[%c1_60, %c0_61, %c0_62], %116 {strides = array<i32>} : memref<4x8x1xf32, #tpu.memory_space<vmem>>, vector<1x8x1xf32>,
      %117 = vector.extract_strided_slice %22 {offsets = [0, 32], sizes = [8, 16], strides = [1, 1]} : vector<8x64xf32> to vector<8x16xf32>
      %cst_63 = arith.constant 2.500000e-01 : f32
      %118 = vector.broadcast %cst_63 : f32 to vector<8x16xf32>
      %119 = arith.mulf %117, %118 : vector<8x16xf32>
      %120 = arith.truncf %119 : vector<8x16xf32> to vector<8x16xbf16>
      %121 = vector.extract_strided_slice %24 {offsets = [0, 32], sizes = [8, 16], strides = [1, 1]} : vector<8x64xf32> to vector<8x16xf32>
      %122 = arith.truncf %121 : vector<8x16xf32> to vector<8x16xbf16>
      %123 = vector.extract_strided_slice %26 {offsets = [0, 32], sizes = [8, 16], strides = [1, 1]} : vector<8x64xf32> to vector<8x16xf32>
      %124 = arith.truncf %123 : vector<8x16xf32> to vector<8x16xbf16>
      %cst_64 = arith.constant dense<0.000000e+00> : vector<8x8xf32>
      %125 = tpu.matmul %120, %122, %cst_64 {dimension_numbers = #tpu.dot_dimension_numbers<[1], [1], [0], [0], [0, 0, 1, 0], [], []>} : vector<8x16xbf16>, vector<8x16xbf16>, vector<8x8xf32> -> vector<8x8xf32>
      %cst_65 = arith.constant -1.000000e+30 : f32
      %126 = vector.broadcast %cst_65 : f32 to vector<8x8xf32>
      %127 = arith.select %20, %125, %126 : vector<8x8xi1>, vector<8x8xf32>
      %c2 = arith.constant 2 : index
      %c0_66 = arith.constant 0 : index
      %c0_67 = arith.constant 0 : index
      %128 = vector.load %arg7[%c2, %c0_66, %c0_67] : memref<4x8x1xf32, #tpu.memory_space<vmem>>, vector<1x8x1xf32>
      %129 = vector.shape_cast %128 : vector<1x8x1xf32> to vector<8x1xf32>
      %cst_68 = arith.constant dense<0xFF800000> : vector<8xf32>
      %130 = vector.multi_reduction <maximumf>, %127, %cst_68 [1] : vector<8x8xf32> to vector<8xf32>
      %131 = vector.shape_cast %130 : vector<8xf32> to vector<8x1xf32>
      %132 = arith.maximumf %129, %131 : vector<8x1xf32>
      %133 = vector.broadcast %132 : vector<8x1xf32> to vector<8x8xf32>
      %134 = arith.subf %127, %133 : vector<8x8xf32>
      %135 = math.exp %134 : vector<8x8xf32>
      %cst_69 = arith.constant 0.000000e+00 : f32
      %136 = vector.broadcast %cst_69 : f32 to vector<8x8xf32>
      %137 = arith.select %20, %135, %136 : vector<8x8xi1>, vector<8x8xf32>
      %138 = arith.subf %129, %132 : vector<8x1xf32>
      %139 = math.exp %138 : vector<8x1xf32>
      %c2_70 = arith.constant 2 : index
      %c0_71 = arith.constant 0 : index
      %c0_72 = arith.constant 0 : index
      %140 = vector.load %arg8[%c2_70, %c0_71, %c0_72] : memref<4x8x1xf32, #tpu.memory_space<vmem>>, vector<1x8x1xf32>
      %141 = vector.shape_cast %140 : vector<1x8x1xf32> to vector<8x1xf32>
      %142 = arith.mulf %139, %141 : vector<8x1xf32>
      %cst_73 = arith.constant dense<0.000000e+00> : vector<8xf32>
      %143 = vector.multi_reduction <add>, %137, %cst_73 [1] : vector<8x8xf32> to vector<8xf32>
      %144 = vector.shape_cast %143 : vector<8xf32> to vector<8x1xf32>
      %145 = arith.addf %142, %144 : vector<8x1xf32>
      %c2_74 = arith.constant 2 : index
      %c0_75 = arith.constant 0 : index
      %c0_76 = arith.constant 0 : index
      %146 = vector.load %arg8[%c2_74, %c0_75, %c0_76] : memref<4x8x1xf32, #tpu.memory_space<vmem>>, vector<1x8x1xf32>
      %147 = vector.shape_cast %146 : vector<1x8x1xf32> to vector<8x1xf32>
      %148 = vector.shape_cast %145 : vector<8x1xf32> to vector<1x8x1xf32>
      tpu.vector_store %arg8[%c2_74, %c0_75, %c0_76], %148 {strides = array<i32>} : memref<4x8x1xf32, #tpu.memory_space<vmem>>, vector<1x8x1xf32>,
      %c2_77 = arith.constant 2 : index
      %c0_78 = arith.constant 0 : index
      %c0_79 = arith.constant 0 : index
      %149 = vector.load %arg9[%c2_77, %c0_78, %c0_79] : memref<4x8x16xf32, #tpu.memory_space<vmem>>, vector<1x8x16xf32>
      %150 = vector.shape_cast %149 : vector<1x8x16xf32> to vector<8x16xf32>
      %151 = vector.broadcast %139 : vector<8x1xf32> to vector<8x16xf32>
      %152 = arith.mulf %151, %150 : vector<8x16xf32>
      %153 = arith.truncf %137 : vector<8x8xf32> to vector<8x8xbf16>
      %cst_80 = arith.constant dense<0.000000e+00> : vector<8x16xf32>
      %154 = tpu.matmul %153, %124, %cst_80 {dimension_numbers = #tpu.dot_dimension_numbers<[1], [0], [0], [1], [0, 0, 1, 1], [], []>} : vector<8x8xbf16>, vector<8x16xbf16>, vector<8x16xf32> -> vector<8x16xf32>
      %155 = arith.addf %152, %154 : vector<8x16xf32>
      %c2_81 = arith.constant 2 : index
      %c0_82 = arith.constant 0 : index
      %c0_83 = arith.constant 0 : index
      %156 = vector.load %arg9[%c2_81, %c0_82, %c0_83] : memref<4x8x16xf32, #tpu.memory_space<vmem>>, vector<1x8x16xf32>
      %157 = vector.shape_cast %156 : vector<1x8x16xf32> to vector<8x16xf32>
      %158 = vector.shape_cast %155 : vector<8x16xf32> to vector<1x8x16xf32>
      tpu.vector_store %arg9[%c2_81, %c0_82, %c0_83], %158 {strides = array<i32>} : memref<4x8x16xf32, #tpu.memory_space<vmem>>, vector<1x8x16xf32>,
      %c2_84 = arith.constant 2 : index
      %c0_85 = arith.constant 0 : index
      %c0_86 = arith.constant 0 : index
      %159 = vector.load %arg7[%c2_84, %c0_85, %c0_86] : memref<4x8x1xf32, #tpu.memory_space<vmem>>, vector<1x8x1xf32>
      %160 = vector.shape_cast %159 : vector<1x8x1xf32> to vector<8x1xf32>
      %161 = vector.shape_cast %132 : vector<8x1xf32> to vector<1x8x1xf32>
      tpu.vector_store %arg7[%c2_84, %c0_85, %c0_86], %161 {strides = array<i32>} : memref<4x8x1xf32, #tpu.memory_space<vmem>>, vector<1x8x1xf32>,
      %162 = vector.extract_strided_slice %22 {offsets = [0, 48], sizes = [8, 16], strides = [1, 1]} : vector<8x64xf32> to vector<8x16xf32>
      %cst_87 = arith.constant 2.500000e-01 : f32
      %163 = vector.broadcast %cst_87 : f32 to vector<8x16xf32>
      %164 = arith.mulf %162, %163 : vector<8x16xf32>
      %165 = arith.truncf %164 : vector<8x16xf32> to vector<8x16xbf16>
      %166 = vector.extract_strided_slice %24 {offsets = [0, 48], sizes = [8, 16], strides = [1, 1]} : vector<8x64xf32> to vector<8x16xf32>
      %167 = arith.truncf %166 : vector<8x16xf32> to vector<8x16xbf16>
      %168 = vector.extract_strided_slice %26 {offsets = [0, 48], sizes = [8, 16], strides = [1, 1]} : vector<8x64xf32> to vector<8x16xf32>
      %169 = arith.truncf %168 : vector<8x16xf32> to vector<8x16xbf16>
      %cst_88 = arith.constant dense<0.000000e+00> : vector<8x8xf32>
      %170 = tpu.matmul %165, %167, %cst_88 {dimension_numbers = #tpu.dot_dimension_numbers<[1], [1], [0], [0], [0, 0, 1, 0], [], []>} : vector<8x16xbf16>, vector<8x16xbf16>, vector<8x8xf32> -> vector<8x8xf32>
      %cst_89 = arith.constant -1.000000e+30 : f32
      %171 = vector.broadcast %cst_89 : f32 to vector<8x8xf32>
      %172 = arith.select %20, %170, %171 : vector<8x8xi1>, vector<8x8xf32>
      %c3 = arith.constant 3 : index
      %c0_90 = arith.constant 0 : index
      %c0_91 = arith.constant 0 : index
      %173 = vector.load %arg7[%c3, %c0_90, %c0_91] : memref<4x8x1xf32, #tpu.memory_space<vmem>>, vector<1x8x1xf32>
      %174 = vector.shape_cast %173 : vector<1x8x1xf32> to vector<8x1xf32>
      %cst_92 = arith.constant dense<0xFF800000> : vector<8xf32>
      %175 = vector.multi_reduction <maximumf>, %172, %cst_92 [1] : vector<8x8xf32> to vector<8xf32>
      %176 = vector.shape_cast %175 : vector<8xf32> to vector<8x1xf32>
      %177 = arith.maximumf %174, %176 : vector<8x1xf32>
      %178 = vector.broadcast %177 : vector<8x1xf32> to vector<8x8xf32>
      %179 = arith.subf %172, %178 : vector<8x8xf32>
      %180 = math.exp %179 : vector<8x8xf32>
      %cst_93 = arith.constant 0.000000e+00 : f32
      %181 = vector.broadcast %cst_93 : f32 to vector<8x8xf32>
      %182 = arith.select %20, %180, %181 : vector<8x8xi1>, vector<8x8xf32>
      %183 = arith.subf %174, %177 : vector<8x1xf32>
      %184 = math.exp %183 : vector<8x1xf32>
      %c3_94 = arith.constant 3 : index
      %c0_95 = arith.constant 0 : index
      %c0_96 = arith.constant 0 : index
      %185 = vector.load %arg8[%c3_94, %c0_95, %c0_96] : memref<4x8x1xf32, #tpu.memory_space<vmem>>, vector<1x8x1xf32>
      %186 = vector.shape_cast %185 : vector<1x8x1xf32> to vector<8x1xf32>
      %187 = arith.mulf %184, %186 : vector<8x1xf32>
      %cst_97 = arith.constant dense<0.000000e+00> : vector<8xf32>
      %188 = vector.multi_reduction <add>, %182, %cst_97 [1] : vector<8x8xf32> to vector<8xf32>
      %189 = vector.shape_cast %188 : vector<8xf32> to vector<8x1xf32>
      %190 = arith.addf %187, %189 : vector<8x1xf32>
      %c3_98 = arith.constant 3 : index
      %c0_99 = arith.constant 0 : index
      %c0_100 = arith.constant 0 : index
      %191 = vector.load %arg8[%c3_98, %c0_99, %c0_100] : memref<4x8x1xf32, #tpu.memory_space<vmem>>, vector<1x8x1xf32>
      %192 = vector.shape_cast %191 : vector<1x8x1xf32> to vector<8x1xf32>
      %193 = vector.shape_cast %190 : vector<8x1xf32> to vector<1x8x1xf32>
      tpu.vector_store %arg8[%c3_98, %c0_99, %c0_100], %193 {strides = array<i32>} : memref<4x8x1xf32, #tpu.memory_space<vmem>>, vector<1x8x1xf32>,
      %c3_101 = arith.constant 3 : index
      %c0_102 = arith.constant 0 : index
      %c0_103 = arith.constant 0 : index
      %194 = vector.load %arg9[%c3_101, %c0_102, %c0_103] : memref<4x8x16xf32, #tpu.memory_space<vmem>>, vector<1x8x16xf32>
      %195 = vector.shape_cast %194 : vector<1x8x16xf32> to vector<8x16xf32>
      %196 = vector.broadcast %184 : vector<8x1xf32> to vector<8x16xf32>
      %197 = arith.mulf %196, %195 : vector<8x16xf32>
      %198 = arith.truncf %182 : vector<8x8xf32> to vector<8x8xbf16>
      %cst_104 = arith.constant dense<0.000000e+00> : vector<8x16xf32>
      %199 = tpu.matmul %198, %169, %cst_104 {dimension_numbers = #tpu.dot_dimension_numbers<[1], [0], [0], [1], [0, 0, 1, 1], [], []>} : vector<8x8xbf16>, vector<8x16xbf16>, vector<8x16xf32> -> vector<8x16xf32>
      %200 = arith.addf %197, %199 : vector<8x16xf32>
      %c3_105 = arith.constant 3 : index
      %c0_106 = arith.constant 0 : index
      %c0_107 = arith.constant 0 : index
      %201 = vector.load %arg9[%c3_105, %c0_106, %c0_107] : memref<4x8x16xf32, #tpu.memory_space<vmem>>, vector<1x8x16xf32>
      %202 = vector.shape_cast %201 : vector<1x8x16xf32> to vector<8x16xf32>
      %203 = vector.shape_cast %200 : vector<8x16xf32> to vector<1x8x16xf32>
      tpu.vector_store %arg9[%c3_105, %c0_106, %c0_107], %203 {strides = array<i32>} : memref<4x8x16xf32, #tpu.memory_space<vmem>>, vector<1x8x16xf32>,
      %c3_108 = arith.constant 3 : index
      %c0_109 = arith.constant 0 : index
      %c0_110 = arith.constant 0 : index
      %204 = vector.load %arg7[%c3_108, %c0_109, %c0_110] : memref<4x8x1xf32, #tpu.memory_space<vmem>>, vector<1x8x1xf32>
      %205 = vector.shape_cast %204 : vector<1x8x1xf32> to vector<8x1xf32>
      %206 = vector.shape_cast %177 : vector<8x1xf32> to vector<1x8x1xf32>
      tpu.vector_store %arg7[%c3_108, %c0_109, %c0_110], %206 {strides = array<i32>} : memref<4x8x1xf32, #tpu.memory_space<vmem>>, vector<1x8x1xf32>,
    } else {
    }
    %c0_i32_3 = arith.constant 0 : i32
    %9 = arith.cmpi eq, %arg2, %c0_i32_3 : i32
    %10 = arith.extui %9 : i1 to i32
    %c0_i32_4 = arith.constant 0 : i32
    %11 = arith.cmpi ne, %10, %c0_i32_4 : i32
    scf.if %11 {
      %c0 = arith.constant 0 : index
      %c0_5 = arith.constant 0 : index
      %c0_6 = arith.constant 0 : index
      %12 = vector.load %arg8[%c0, %c0_5, %c0_6] : memref<4x8x1xf32, #tpu.memory_space<vmem>>, vector<1x8x1xf32>
      %13 = vector.shape_cast %12 : vector<1x8x1xf32> to vector<8x1xf32>
      %14 = tpu.reciprocal %13 {approx = true} : vector<8x1xf32> -> vector<8x1xf32>
      %c0_7 = arith.constant 0 : index
      %c0_8 = arith.constant 0 : index
      %c0_9 = arith.constant 0 : index
      %15 = vector.load %arg9[%c0_7, %c0_8, %c0_9] : memref<4x8x16xf32, #tpu.memory_space<vmem>>, vector<1x8x16xf32>
      %16 = vector.shape_cast %15 : vector<1x8x16xf32> to vector<8x16xf32>
      %17 = vector.broadcast %14 : vector<8x1xf32> to vector<8x16xf32>
      %18 = arith.mulf %16, %17 : vector<8x16xf32>
      %c1 = arith.constant 1 : index
      %c0_10 = arith.constant 0 : index
      %c0_11 = arith.constant 0 : index
      %19 = vector.load %arg8[%c1, %c0_10, %c0_11] : memref<4x8x1xf32, #tpu.memory_space<vmem>>, vector<1x8x1xf32>
      %20 = vector.shape_cast %19 : vector<1x8x1xf32> to vector<8x1xf32>
      %21 = tpu.reciprocal %20 {approx = true} : vector<8x1xf32> -> vector<8x1xf32>
      %c1_12 = arith.constant 1 : index
      %c0_13 = arith.constant 0 : index
      %c0_14 = arith.constant 0 : index
      %22 = vector.load %arg9[%c1_12, %c0_13, %c0_14] : memref<4x8x16xf32, #tpu.memory_space<vmem>>, vector<1x8x16xf32>
      %23 = vector.shape_cast %22 : vector<1x8x16xf32> to vector<8x16xf32>
      %24 = vector.broadcast %21 : vector<8x1xf32> to vector<8x16xf32>
      %25 = arith.mulf %23, %24 : vector<8x16xf32>
      %c2 = arith.constant 2 : index
      %c0_15 = arith.constant 0 : index
      %c0_16 = arith.constant 0 : index
      %26 = vector.load %arg8[%c2, %c0_15, %c0_16] : memref<4x8x1xf32, #tpu.memory_space<vmem>>, vector<1x8x1xf32>
      %27 = vector.shape_cast %26 : vector<1x8x1xf32> to vector<8x1xf32>
      %28 = tpu.reciprocal %27 {approx = true} : vector<8x1xf32> -> vector<8x1xf32>
      %c2_17 = arith.constant 2 : index
      %c0_18 = arith.constant 0 : index
      %c0_19 = arith.constant 0 : index
      %29 = vector.load %arg9[%c2_17, %c0_18, %c0_19] : memref<4x8x16xf32, #tpu.memory_space<vmem>>, vector<1x8x16xf32>
      %30 = vector.shape_cast %29 : vector<1x8x16xf32> to vector<8x16xf32>
      %31 = vector.broadcast %28 : vector<8x1xf32> to vector<8x16xf32>
      %32 = arith.mulf %30, %31 : vector<8x16xf32>
      %c3 = arith.constant 3 : index
      %c0_20 = arith.constant 0 : index
      %c0_21 = arith.constant 0 : index
      %33 = vector.load %arg8[%c3, %c0_20, %c0_21] : memref<4x8x1xf32, #tpu.memory_space<vmem>>, vector<1x8x1xf32>
      %34 = vector.shape_cast %33 : vector<1x8x1xf32> to vector<8x1xf32>
      %35 = tpu.reciprocal %34 {approx = true} : vector<8x1xf32> -> vector<8x1xf32>
      %c3_22 = arith.constant 3 : index
      %c0_23 = arith.constant 0 : index
      %c0_24 = arith.constant 0 : index
      %36 = vector.load %arg9[%c3_22, %c0_23, %c0_24] : memref<4x8x16xf32, #tpu.memory_space<vmem>>, vector<1x8x16xf32>
      %37 = vector.shape_cast %36 : vector<1x8x16xf32> to vector<8x16xf32>
      %38 = vector.broadcast %35 : vector<8x1xf32> to vector<8x16xf32>
      %39 = arith.mulf %37, %38 : vector<8x16xf32>
      %40 = tpu.concatenate %18, %25, %32, %39 in 1 : vector<8x16xf32>, vector<8x16xf32>, vector<8x16xf32>, vector<8x16xf32> -> vector<8x64xf32>
      %c0_25 = arith.constant 0 : index
      %c0_26 = arith.constant 0 : index
      %c0_27 = arith.constant 0 : index
      %41 = vector.load %arg6[%c0_25, %c0_26, %c0_27] : memref<1x8x64xf32, #tpu.memory_space<vmem>>, vector<1x8x64xf32>
      %42 = vector.shape_cast %41 : vector<1x8x64xf32> to vector<8x64xf32>
      %43 = vector.shape_cast %40 : vector<8x64xf32> to vector<1x8x64xf32>
      tpu.vector_store %arg6[%c0_25, %c0_26, %c0_27], %43 {strides = array<i32>} : memref<1x8x64xf32, #tpu.memory_space<vmem>>, vector<1x8x64xf32>,
    } else {
    }
    return
  }
  func.func @transform_0(%arg0: i32, %arg1: i32, %arg2: i32) -> (i32, i32, i32) {
    %c0_i32 = arith.constant 0 : i32
    %c0_i32_0 = arith.constant 0 : i32
    return %arg0, %arg1, %c0_i32 : i32, i32, i32
  }
  func.func @transform_1(%arg0: i32, %arg1: i32, %arg2: i32) -> (i32, i32, i32) {
    %c0_i32 = arith.constant 0 : i32
    %c0_i32_0 = arith.constant 0 : i32
    return %arg0, %arg2, %c0_i32 : i32, i32, i32
  }
  func.func @transform_2(%arg0: i32, %arg1: i32, %arg2: i32) -> (i32, i32, i32) {
    %c0_i32 = arith.constant 0 : i32
    %c0_i32_0 = arith.constant 0 : i32
    return %arg0, %arg2, %c0_i32 : i32, i32, i32
  }
  func.func @transform_3(%arg0: i32, %arg1: i32, %arg2: i32) -> (i32, i32, i32) {
    %c0_i32 = arith.constant 0 : i32
    %c0_i32_0 = arith.constant 0 : i32
    return %arg0, %arg1, %c0_i32 : i32, i32, i32
  }
}

module attributes {stable_mosaic.version = 11 : i64} {
  func.func @_ln_swiglu_kernel(%arg0: i32, %arg1: i32, %arg2: memref<16x64xf32, #tpu.memory_space<vmem>>, %arg3: memref<1x64xf32, #tpu.memory_space<vmem>>, %arg4: memref<1x64xf32, #tpu.memory_space<vmem>>, %arg5: memref<64x256xbf16, #tpu.memory_space<vmem>>, %arg6: memref<64x256xbf16, #tpu.memory_space<vmem>>, %arg7: memref<256x64xbf16, #tpu.memory_space<vmem>>, %arg8: memref<16x64xf32, #tpu.memory_space<vmem>>, %arg9: memref<16x64xf32, #tpu.memory_space<vmem>>) attributes {dimension_semantics = [#tpu.dimension_semantics<parallel>, #tpu.dimension_semantics<arbitrary>], iteration_bounds = array<i64: 1, 1>, scalar_prefetch = 0 : i64, scratch_operands = 1 : i64, tpu.core_type = #tpu.core_type<tc>, window_params = [{transform_indices = @transform_0, window_bounds = array<i64: 16, 64>}, {pipeline_mode = #tpu.pipeline_mode<synchronous>, transform_indices = @transform_1, window_bounds = array<i64: 1, 64>}, {pipeline_mode = #tpu.pipeline_mode<synchronous>, transform_indices = @transform_2, window_bounds = array<i64: 1, 64>}, {transform_indices = @transform_3, window_bounds = array<i64: 64, 256>}, {transform_indices = @transform_4, window_bounds = array<i64: 64, 256>}, {transform_indices = @transform_5, window_bounds = array<i64: 256, 64>}, {transform_indices = @transform_6, window_bounds = array<i64: 16, 64>}]} {
    %c0_i32 = arith.constant 0 : i32
    %0 = arith.cmpi eq, %arg1, %c0_i32 : i32
    %1 = arith.extui %0 : i1 to i32
    %c0_i32_0 = arith.constant 0 : i32
    %2 = arith.cmpi ne, %1, %c0_i32_0 : i32
    scf.if %2 {
      %cst_26 = arith.constant 0.000000e+00 : f32
      %49 = vector.broadcast %cst_26 : f32 to vector<16x64xf32>
      %c0_27 = arith.constant 0 : index
      %c0_28 = arith.constant 0 : index
      %50 = vector.load %arg9[%c0_27, %c0_28] : memref<16x64xf32, #tpu.memory_space<vmem>>, vector<16x64xf32>
      tpu.vector_store %arg9[%c0_27, %c0_28], %49 {strides = array<i32>} : memref<16x64xf32, #tpu.memory_space<vmem>>, vector<16x64xf32>,
    } else {
    }
    %c0 = arith.constant 0 : index
    %c0_1 = arith.constant 0 : index
    %3 = vector.load %arg2[%c0, %c0_1] : memref<16x64xf32, #tpu.memory_space<vmem>>, vector<16x64xf32>
    %cst = arith.constant dense<0.000000e+00> : vector<16xf32>
    %4 = vector.multi_reduction <add>, %3, %cst [1] : vector<16x64xf32> to vector<16xf32>
    %5 = vector.shape_cast %4 : vector<16xf32> to vector<16x1xf32>
    %cst_2 = arith.constant 6.400000e+01 : f32
    %6 = vector.broadcast %cst_2 : f32 to vector<16x1xf32>
    %7 = arith.divf %5, %6 : vector<16x1xf32>
    %8 = vector.broadcast %7 : vector<16x1xf32> to vector<16x64xf32>
    %9 = arith.subf %3, %8 : vector<16x64xf32>
    %10 = arith.mulf %9, %9 : vector<16x64xf32>
    %cst_3 = arith.constant dense<0.000000e+00> : vector<16xf32>
    %11 = vector.multi_reduction <add>, %10, %cst_3 [1] : vector<16x64xf32> to vector<16xf32>
    %12 = vector.shape_cast %11 : vector<16xf32> to vector<16x1xf32>
    %cst_4 = arith.constant 6.400000e+01 : f32
    %13 = vector.broadcast %cst_4 : f32 to vector<16x1xf32>
    %14 = arith.divf %12, %13 : vector<16x1xf32>
    %15 = vector.broadcast %7 : vector<16x1xf32> to vector<16x64xf32>
    %16 = arith.subf %3, %15 : vector<16x64xf32>
    %cst_5 = arith.constant 9.99999974E-6 : f32
    %17 = vector.broadcast %cst_5 : f32 to vector<16x1xf32>
    %18 = arith.addf %14, %17 : vector<16x1xf32>
    %19 = math.rsqrt %18 : vector<16x1xf32>
    %20 = vector.broadcast %19 : vector<16x1xf32> to vector<16x64xf32>
    %21 = arith.mulf %16, %20 : vector<16x64xf32>
    %c0_6 = arith.constant 0 : index
    %c0_7 = arith.constant 0 : index
    %22 = vector.load %arg3[%c0_6, %c0_7] : memref<1x64xf32, #tpu.memory_space<vmem>>, vector<1x64xf32>
    %23 = vector.broadcast %22 : vector<1x64xf32> to vector<16x64xf32>
    %24 = arith.mulf %21, %23 : vector<16x64xf32>
    %c0_8 = arith.constant 0 : index
    %c0_9 = arith.constant 0 : index
    %25 = vector.load %arg4[%c0_8, %c0_9] : memref<1x64xf32, #tpu.memory_space<vmem>>, vector<1x64xf32>
    %26 = vector.broadcast %25 : vector<1x64xf32> to vector<16x64xf32>
    %27 = arith.addf %24, %26 : vector<16x64xf32>
    %28 = arith.truncf %27 : vector<16x64xf32> to vector<16x64xbf16>
    %c0_10 = arith.constant 0 : index
    %c0_11 = arith.constant 0 : index
    %29 = vector.load %arg5[%c0_10, %c0_11] : memref<64x256xbf16, #tpu.memory_space<vmem>>, vector<64x256xbf16>
    %cst_12 = arith.constant dense<0.000000e+00> : vector<16x256xf32>
    %30 = tpu.matmul %28, %29, %cst_12 {dimension_numbers = #tpu.dot_dimension_numbers<[1], [0], [0], [1], [0, 0, 1, 1], [], []>} : vector<16x64xbf16>, vector<64x256xbf16>, vector<16x256xf32> -> vector<16x256xf32>
    %c0_13 = arith.constant 0 : index
    %c0_14 = arith.constant 0 : index
    %31 = vector.load %arg6[%c0_13, %c0_14] : memref<64x256xbf16, #tpu.memory_space<vmem>>, vector<64x256xbf16>
    %cst_15 = arith.constant dense<0.000000e+00> : vector<16x256xf32>
    %32 = tpu.matmul %28, %31, %cst_15 {dimension_numbers = #tpu.dot_dimension_numbers<[1], [0], [0], [1], [0, 0, 1, 1], [], []>} : vector<16x64xbf16>, vector<64x256xbf16>, vector<16x256xf32> -> vector<16x256xf32>
    %33 = arith.negf %30 : vector<16x256xf32>
    %34 = math.exp %33 : vector<16x256xf32>
    %cst_16 = arith.constant 1.000000e+00 : f32
    %35 = vector.broadcast %cst_16 : f32 to vector<16x256xf32>
    %36 = arith.addf %35, %34 : vector<16x256xf32>
    %37 = arith.divf %35, %36 : vector<16x256xf32>
    %38 = arith.mulf %30, %37 : vector<16x256xf32>
    %39 = arith.mulf %38, %32 : vector<16x256xf32>
    %c0_17 = arith.constant 0 : index
    %c0_18 = arith.constant 0 : index
    %40 = vector.load %arg9[%c0_17, %c0_18] : memref<16x64xf32, #tpu.memory_space<vmem>>, vector<16x64xf32>
    %41 = arith.truncf %39 : vector<16x256xf32> to vector<16x256xbf16>
    %c0_19 = arith.constant 0 : index
    %c0_20 = arith.constant 0 : index
    %42 = vector.load %arg7[%c0_19, %c0_20] : memref<256x64xbf16, #tpu.memory_space<vmem>>, vector<256x64xbf16>
    %cst_21 = arith.constant dense<0.000000e+00> : vector<16x64xf32>
    %43 = tpu.matmul %41, %42, %cst_21 {dimension_numbers = #tpu.dot_dimension_numbers<[1], [0], [0], [1], [0, 0, 1, 1], [], []>} : vector<16x256xbf16>, vector<256x64xbf16>, vector<16x64xf32> -> vector<16x64xf32>
    %44 = arith.addf %40, %43 : vector<16x64xf32>
    %c0_22 = arith.constant 0 : index
    %c0_23 = arith.constant 0 : index
    %45 = vector.load %arg9[%c0_22, %c0_23] : memref<16x64xf32, #tpu.memory_space<vmem>>, vector<16x64xf32>
    tpu.vector_store %arg9[%c0_22, %c0_23], %44 {strides = array<i32>} : memref<16x64xf32, #tpu.memory_space<vmem>>, vector<16x64xf32>,
    %c0_i32_24 = arith.constant 0 : i32
    %46 = arith.cmpi eq, %arg1, %c0_i32_24 : i32
    %47 = arith.extui %46 : i1 to i32
    %c0_i32_25 = arith.constant 0 : i32
    %48 = arith.cmpi ne, %47, %c0_i32_25 : i32
    scf.if %48 {
      %c0_26 = arith.constant 0 : index
      %c0_27 = arith.constant 0 : index
      %49 = vector.load %arg9[%c0_26, %c0_27] : memref<16x64xf32, #tpu.memory_space<vmem>>, vector<16x64xf32>
      %c0_28 = arith.constant 0 : index
      %c0_29 = arith.constant 0 : index
      %50 = vector.load %arg8[%c0_28, %c0_29] : memref<16x64xf32, #tpu.memory_space<vmem>>, vector<16x64xf32>
      tpu.vector_store %arg8[%c0_28, %c0_29], %49 {strides = array<i32>} : memref<16x64xf32, #tpu.memory_space<vmem>>, vector<16x64xf32>,
    } else {
    }
    return
  }
  func.func @transform_0(%arg0: i32, %arg1: i32) -> (i32, i32) {
    %c0_i32 = arith.constant 0 : i32
    %c0_i32_0 = arith.constant 0 : i32
    return %arg0, %c0_i32 : i32, i32
  }
  func.func @transform_1(%arg0: i32, %arg1: i32) -> (i32, i32) {
    %c0_i32 = arith.constant 0 : i32
    %c0_i32_0 = arith.constant 0 : i32
    %c0_i32_1 = arith.constant 0 : i32
    return %c0_i32, %c0_i32_0 : i32, i32
  }
  func.func @transform_2(%arg0: i32, %arg1: i32) -> (i32, i32) {
    %c0_i32 = arith.constant 0 : i32
    %c0_i32_0 = arith.constant 0 : i32
    %c0_i32_1 = arith.constant 0 : i32
    return %c0_i32, %c0_i32_0 : i32, i32
  }
  func.func @transform_3(%arg0: i32, %arg1: i32) -> (i32, i32) {
    %c0_i32 = arith.constant 0 : i32
    %c0_i32_0 = arith.constant 0 : i32
    return %c0_i32, %arg1 : i32, i32
  }
  func.func @transform_4(%arg0: i32, %arg1: i32) -> (i32, i32) {
    %c0_i32 = arith.constant 0 : i32
    %c0_i32_0 = arith.constant 0 : i32
    return %c0_i32, %arg1 : i32, i32
  }
  func.func @transform_5(%arg0: i32, %arg1: i32) -> (i32, i32) {
    %c0_i32 = arith.constant 0 : i32
    %c0_i32_0 = arith.constant 0 : i32
    return %arg1, %c0_i32 : i32, i32
  }
  func.func @transform_6(%arg0: i32, %arg1: i32) -> (i32, i32) {
    %c0_i32 = arith.constant 0 : i32
    %c0_i32_0 = arith.constant 0 : i32
    return %arg0, %c0_i32 : i32, i32
  }
}

module attributes {stable_mosaic.version = 11 : i64} {
  func.func @_ln_matmul_kernel(%arg0: i32, %arg1: i32, %arg2: memref<16x64xf32, #tpu.memory_space<vmem>>, %arg3: memref<1x64xf32, #tpu.memory_space<vmem>>, %arg4: memref<1x64xf32, #tpu.memory_space<vmem>>, %arg5: memref<128x64xbf16, #tpu.memory_space<vmem>>, %arg6: memref<16x128xf32, #tpu.memory_space<vmem>>) attributes {dimension_semantics = [#tpu.dimension_semantics<parallel>, #tpu.dimension_semantics<parallel>], iteration_bounds = array<i64: 1, 1>, scalar_prefetch = 0 : i64, scratch_operands = 0 : i64, tpu.core_type = #tpu.core_type<tc>, window_params = [{transform_indices = @transform_0, window_bounds = array<i64: 16, 64>}, {pipeline_mode = #tpu.pipeline_mode<synchronous>, transform_indices = @transform_1, window_bounds = array<i64: 1, 64>}, {pipeline_mode = #tpu.pipeline_mode<synchronous>, transform_indices = @transform_2, window_bounds = array<i64: 1, 64>}, {transform_indices = @transform_3, window_bounds = array<i64: 128, 64>}, {transform_indices = @transform_4, window_bounds = array<i64: 16, 128>}]} {
    %c0 = arith.constant 0 : index
    %c0_0 = arith.constant 0 : index
    %0 = vector.load %arg2[%c0, %c0_0] : memref<16x64xf32, #tpu.memory_space<vmem>>, vector<16x64xf32>
    %cst = arith.constant dense<0.000000e+00> : vector<16xf32>
    %1 = vector.multi_reduction <add>, %0, %cst [1] : vector<16x64xf32> to vector<16xf32>
    %2 = vector.shape_cast %1 : vector<16xf32> to vector<16x1xf32>
    %cst_1 = arith.constant 6.400000e+01 : f32
    %3 = vector.broadcast %cst_1 : f32 to vector<16x1xf32>
    %4 = arith.divf %2, %3 : vector<16x1xf32>
    %5 = vector.broadcast %4 : vector<16x1xf32> to vector<16x64xf32>
    %6 = arith.subf %0, %5 : vector<16x64xf32>
    %7 = arith.mulf %6, %6 : vector<16x64xf32>
    %cst_2 = arith.constant dense<0.000000e+00> : vector<16xf32>
    %8 = vector.multi_reduction <add>, %7, %cst_2 [1] : vector<16x64xf32> to vector<16xf32>
    %9 = vector.shape_cast %8 : vector<16xf32> to vector<16x1xf32>
    %cst_3 = arith.constant 6.400000e+01 : f32
    %10 = vector.broadcast %cst_3 : f32 to vector<16x1xf32>
    %11 = arith.divf %9, %10 : vector<16x1xf32>
    %12 = vector.broadcast %4 : vector<16x1xf32> to vector<16x64xf32>
    %13 = arith.subf %0, %12 : vector<16x64xf32>
    %cst_4 = arith.constant 9.99999974E-6 : f32
    %14 = vector.broadcast %cst_4 : f32 to vector<16x1xf32>
    %15 = arith.addf %11, %14 : vector<16x1xf32>
    %16 = math.rsqrt %15 : vector<16x1xf32>
    %17 = vector.broadcast %16 : vector<16x1xf32> to vector<16x64xf32>
    %18 = arith.mulf %13, %17 : vector<16x64xf32>
    %c0_5 = arith.constant 0 : index
    %c0_6 = arith.constant 0 : index
    %19 = vector.load %arg3[%c0_5, %c0_6] : memref<1x64xf32, #tpu.memory_space<vmem>>, vector<1x64xf32>
    %20 = vector.broadcast %19 : vector<1x64xf32> to vector<16x64xf32>
    %21 = arith.mulf %18, %20 : vector<16x64xf32>
    %c0_7 = arith.constant 0 : index
    %c0_8 = arith.constant 0 : index
    %22 = vector.load %arg4[%c0_7, %c0_8] : memref<1x64xf32, #tpu.memory_space<vmem>>, vector<1x64xf32>
    %23 = vector.broadcast %22 : vector<1x64xf32> to vector<16x64xf32>
    %24 = arith.addf %21, %23 : vector<16x64xf32>
    %25 = arith.truncf %24 : vector<16x64xf32> to vector<16x64xbf16>
    %c0_9 = arith.constant 0 : index
    %c0_10 = arith.constant 0 : index
    %26 = vector.load %arg5[%c0_9, %c0_10] : memref<128x64xbf16, #tpu.memory_space<vmem>>, vector<128x64xbf16>
    %cst_11 = arith.constant dense<0.000000e+00> : vector<16x128xf32>
    %27 = tpu.matmul %25, %26, %cst_11 {dimension_numbers = #tpu.dot_dimension_numbers<[1], [1], [0], [0], [0, 0, 1, 0], [], []>} : vector<16x64xbf16>, vector<128x64xbf16>, vector<16x128xf32> -> vector<16x128xf32>
    %c0_12 = arith.constant 0 : index
    %c0_13 = arith.constant 0 : index
    %28 = vector.load %arg6[%c0_12, %c0_13] : memref<16x128xf32, #tpu.memory_space<vmem>>, vector<16x128xf32>
    tpu.vector_store %arg6[%c0_12, %c0_13], %27 {strides = array<i32>} : memref<16x128xf32, #tpu.memory_space<vmem>>, vector<16x128xf32>,
    return
  }
  func.func @transform_0(%arg0: i32, %arg1: i32) -> (i32, i32) {
    %c0_i32 = arith.constant 0 : i32
    %c0_i32_0 = arith.constant 0 : i32
    return %arg0, %c0_i32 : i32, i32
  }
  func.func @transform_1(%arg0: i32, %arg1: i32) -> (i32, i32) {
    %c0_i32 = arith.constant 0 : i32
    %c0_i32_0 = arith.constant 0 : i32
    %c0_i32_1 = arith.constant 0 : i32
    return %c0_i32, %c0_i32_0 : i32, i32
  }
  func.func @transform_2(%arg0: i32, %arg1: i32) -> (i32, i32) {
    %c0_i32 = arith.constant 0 : i32
    %c0_i32_0 = arith.constant 0 : i32
    %c0_i32_1 = arith.constant 0 : i32
    return %c0_i32, %c0_i32_0 : i32, i32
  }
  func.func @transform_3(%arg0: i32, %arg1: i32) -> (i32, i32) {
    %c0_i32 = arith.constant 0 : i32
    %c0_i32_0 = arith.constant 0 : i32
    return %arg1, %c0_i32 : i32, i32
  }
  func.func @transform_4(%arg0: i32, %arg1: i32) -> (i32, i32) {
    %c0_i32 = arith.constant 0 : i32
    return %arg0, %arg1 : i32, i32
  }
}

</mosaic_0001>

<llo_original>
// kernel: gpt_forward.11
$region0: #{gpt_forward.11}
  #allocation0 [shape = 'u32[]', space=smem, size = 0x4, offset = 0x4, fixed_abs, tag = 'smem constant byte address 0x4 - core index']
  #allocation1 [shape = 'u32[72,128]{1,0:T(1,128)}', space=vmem, size = 0x9000, scoped, tag = 'internal scratch']
  #allocation2 [shape = 'f32[16,64]{1,0:T(8,128)}', space=vmem, size = 0x2000, scoped, tag = 'scratch operand']
  %s0 = inlined_call_operand.vmem [shape: f32[16,64], index: 0, kind: input, shape index: {}]
  %s1 = inlined_call_operand.vmem [shape: bf16[64,64], index: 1, kind: input, shape index: {}]
  %s2 = inlined_call_operand.vmem [shape: f32[16,64], index: 2, kind: output, shape index: {}]
  %s3 = sld [smem:[#allocation0]]
  $region26: #{gpt_forward.11} parent=0
    _
  %s5 = ssub.s32 1, %s3
  %s6 = scalar_select 0, %s5, %s3
  // Predicated region
  $region2: #{gpt_forward.11} parent=0 // pred_check
    _
  $region3: #{gpt_forward.11} parent=0 // pred_check_branch
    %8 = sbr.rel (0) target = $region5
  $region4: #{gpt_forward.11} parent=0 // pred_region
    _
  $region5: #{gpt_forward.11} parent=0 // pred_fallthru
    _
  // Predicated region
  $region6: #{gpt_forward.11} parent=0 // pred_check
    _
  $region7: #{gpt_forward.11} parent=0 // pred_check_branch
    %10 = sbr.rel (0) target = $region9
  $region8: #{gpt_forward.11} parent=0 // pred_region
    _
  $region9: #{gpt_forward.11} parent=0 // pred_fallthru
    _
  %p12 = scmp.eq.s32.totalorder 0, 0
  // Predicated region
  $region10: #{gpt_forward.11} parent=0 // pred_check
    %p13 = pneg %p12
  $region11: #{gpt_forward.11} parent=0 // pred_check_branch
    %15 = sbr.rel (%p13) target = $region13
  $region12: #{gpt_forward.11} parent=0 // pred_region
    %vm16 = vcmask 523264
    %17 = vst.msk [vmem:[#allocation2] sm:$0xff] %vm16, 0.0
    %18 = vst.msk [vmem:[#allocation2 + $0x8] sm:$0xff] %vm16, 0.0
  $region13: #{gpt_forward.11} parent=0 // pred_fallthru
    _
  %v19 = vld [vmem:[#allocation2] sm:$0xff]
  %v20 = vld [vmem:[#allocation2 + $0x8] sm:$0xff]
  %v21 = vld [vmem:[%s0] sm:$0xff]
  %v22 = vld [vmem:[%s0 + $0x8] sm:$0xff]
  %v23 = vpack.c.bf16 %v22, %v21
  %v24 = vld [vmem:[%s1] sm:$0xf]
  %v25 = vld [vmem:[%s1 + $0x4] sm:$0xf]
  %v26 = vld [vmem:[%s1 + $0x8] sm:$0xf]
  %v27 = vld [vmem:[%s1 + $0xc] sm:$0xf]
  %v28 = vld [vmem:[%s1 + $0x10] sm:$0xf]
  %v29 = vld [vmem:[%s1 + $0x14] sm:$0xf]
  %v30 = vld [vmem:[%s1 + $0x18] sm:$0xf]
  %v31 = vld [vmem:[%s1 + $0x1c] sm:$0xf]
  %v40 = vunpack.c.l.b16 %v24
  %v41 = vunpack.c.l.b16 %v25
  %v42 = vunpack.c.l.b16 %v26
  %v43 = vunpack.c.l.b16 %v27
  %v44 = vunpack.c.l.b16 %v28
  %v45 = vunpack.c.l.b16 %v29
  %v46 = vunpack.c.l.b16 %v30
  %v47 = vunpack.c.l.b16 %v31
  %v48 = vpack.c.b16 %v41, %v40
  %v49 = vpack.c.b16 %v43, %v42
  %v50 = vpack.c.b16 %v45, %v44
  %v51 = vpack.c.b16 %v47, %v46
  %vm56 = vcmask 523264
  %v58 = vsel %vm56, %v23, 0
  %60 = vmatpush.bf16.msra.mxu0 0
  %61 = vmatpush.bf16.msra.mxu0 0
  %62 = vmatpush.bf16.msra.mxu0 0
  %63 = vmatpush.bf16.msra.mxu0 0
  %64 = vmatpush.bf16.msra.mxu0 %v51
  %65 = vmatpush.bf16.msra.mxu0 %v50
  %66 = vmatpush.bf16.msra.mxu0 %v49
  %67 = vmatpush.bf16.msra.mxu0 %v48
  %68 = vmatmul.bf16.gmra.mxu0 %v58
  %v69 = vpop.f32.mrf.mxu0
  %v70 = vadd.f32 0.0, %v69
  %v71 = vpop.f32.mrf.mxu0
  %v72 = vadd.f32 0.0, %v71
  %73 = vdwg.mxu0
  %v74 = vadd.f32 %v19, %v70
  %v75 = vadd.f32 %v20, %v72
  %76 = vst.msk [vmem:[#allocation2] sm:$0xff] %vm56, %v74
  %77 = vst.msk [vmem:[#allocation2 + $0x8] sm:$0xff] %vm56, %v75
  // Predicated region
  $region14: #{gpt_forward.11} parent=0 // pred_check
    %p78 = pneg %p12
  $region15: #{gpt_forward.11} parent=0 // pred_check_branch
    %80 = sbr.rel (%p78) target = $region17
  $region16: #{gpt_forward.11} parent=0 // pred_region
    %v81 = vld [vmem:[#allocation2] sm:$0xff]
    %v82 = vld [vmem:[#allocation2 + $0x8] sm:$0xff]
    %83 = vst.msk [vmem:[%s2] sm:$0xff] %vm56, %v81
    %84 = vst.msk [vmem:[%s2 + $0x8] sm:$0xff] %vm56, %v82
  $region17: #{gpt_forward.11} parent=0 // pred_fallthru
    _
  // Predicated region
  $region18: #{gpt_forward.11} parent=0 // pred_check
    _
  $region19: #{gpt_forward.11} parent=0 // pred_check_branch
    %86 = sbr.rel (0) target = $region21
  $region20: #{gpt_forward.11} parent=0 // pred_region
    _
  $region21: #{gpt_forward.11} parent=0 // pred_fallthru
    _
  // Predicated region
  $region22: #{gpt_forward.11} parent=0 // pred_check
    _
  $region23: #{gpt_forward.11} parent=0 // pred_check_branch
    %88 = sbr.rel (0) target = $region25
  $region24: #{gpt_forward.11} parent=0 // pred_region
    _
  $region25: #{gpt_forward.11} parent=0 // pred_fallthru
    _

// kernel: gpt_forward.9
$region0: #{gpt_forward.9}
  #allocation0 [shape = 'u32[]', space=smem, size = 0x4, offset = 0x4, fixed_abs, tag = 'smem constant byte address 0x4 - core index']
  #allocation1 [shape = 'u32[72,128]{1,0:T(1,128)}', space=vmem, size = 0x9000, scoped, tag = 'internal scratch']
  %s0 = inlined_call_operand.vmem [shape: f32[16,64], index: 0, kind: input, shape index: {}]
  %s1 = inlined_call_operand.vmem [shape: f32[1,64], index: 1, kind: input, shape index: {}]
  %s2 = inlined_call_operand.vmem [shape: f32[1,64], index: 2, kind: input, shape index: {}]
  %s3 = inlined_call_operand.vmem [shape: bf16[64,192], index: 3, kind: input, shape index: {}]
  %s4 = inlined_call_operand.vmem [shape: f32[16,192], index: 4, kind: output, shape index: {}]
  %s5 = sld [smem:[#allocation0]]
  $region26: #{gpt_forward.9} parent=0
    _
  %s7 = ssub.s32 1, %s5
  %s8 = scalar_select 0, %s7, %s5
  // Predicated region
  $region2: #{gpt_forward.9} parent=0 // pred_check
    _
  $region3: #{gpt_forward.9} parent=0 // pred_check_branch
    %10 = sbr.rel (0) target = $region5
  $region4: #{gpt_forward.9} parent=0 // pred_region
    _
  $region5: #{gpt_forward.9} parent=0 // pred_fallthru
    _
  // Predicated region
  $region6: #{gpt_forward.9} parent=0 // pred_check
    _
  $region7: #{gpt_forward.9} parent=0 // pred_check_branch
    %12 = sbr.rel (0) target = $region9
  $region8: #{gpt_forward.9} parent=0 // pred_region
    _
  $region9: #{gpt_forward.9} parent=0 // pred_fallthru
    _
  // Predicated region
  $region10: #{gpt_forward.9} parent=0 // pred_check
    _
  $region11: #{gpt_forward.9} parent=0 // pred_check_branch
    %14 = sbr.rel (0) target = $region13
  $region12: #{gpt_forward.9} parent=0 // pred_region
    _
  $region13: #{gpt_forward.9} parent=0 // pred_fallthru
    _
  // Predicated region
  $region14: #{gpt_forward.9} parent=0 // pred_check
    _
  $region15: #{gpt_forward.9} parent=0 // pred_check_branch
    %16 = sbr.rel (0) target = $region17
  $region16: #{gpt_forward.9} parent=0 // pred_region
    _
  $region17: #{gpt_forward.9} parent=0 // pred_fallthru
    _
  %v18 = vld [vmem:[%s0] sm:$0xff]
  %v19 = vld [vmem:[%s0 + $0x8] sm:$0xff]
  %vm20 = vcmask 523264
  %v21 = vsel %vm20, %v18, 0.0
  %22 = vadd.xlane.f32.xlu0 %v21
  %v23 = vpop.xlane.xlu0 %22
  %v24 = vsel %vm20, %v19, 0.0
  %25 = vadd.xlane.f32.xlu0 %v24
  %v26 = vpop.xlane.xlu0 %25
  %v27 = vrcp.pop 64.0
  %v28 = vmul.f32 64.0, %v27
  %v29 = vsub.f32 1.0, %v28
  %v30 = vmul.f32 %v27, %v29
  %v31 = vadd.f32 %v27, %v30
  %vm32 = vweird.f32 %v27
  %v33 = vsel %vm32, %v27, %v31
  %v34 = vmul.f32 %v23, %v33
  %v35 = vmul.f32 %v26, %v33
  %v36 = vsub.f32 %v18, %v34
  %v37 = vsub.f32 %v19, %v35
  %v38 = vmul.f32 %v36, %v36
  %v39 = vmul.f32 %v37, %v37
  %v40 = vsel %vm20, %v38, 0.0
  %41 = vadd.xlane.f32.xlu0 %v40
  %v42 = vpop.xlane.xlu0 %41
  %v43 = vsel %vm20, %v39, 0.0
  %44 = vadd.xlane.f32.xlu0 %v43
  %v45 = vpop.xlane.xlu0 %44
  %v46 = vmul.f32 %v42, %v33
  %v47 = vmul.f32 %v45, %v33
  %v48 = vadd.f32 %v46, 1e-05
  %v49 = vadd.f32 %v47, 1e-05
  %v50 = vrsqrt.pop %v48
  %v51 = vmul.f32 %v50, %v48
  %v52 = vmul.f32 %v51, %v50
  %v53 = vmul.f32 0.5, %v52
  %v54 = vsub.f32 1.5, %v53
  %v55 = vmul.f32 %v50, %v54
  %vm56 = vweird.f32 %v48
  %vm57 = vweird.f32 %v50
  %vm58 = vmor %vm56, %vm57
  %v59 = vsel %vm58, %v50, %v55
  %v60 = vrsqrt.pop %v49
  %v61 = vmul.f32 %v60, %v49
  %v62 = vmul.f32 %v61, %v60
  %v63 = vmul.f32 0.5, %v62
  %v64 = vsub.f32 1.5, %v63
  %v65 = vmul.f32 %v60, %v64
  %vm66 = vweird.f32 %v49
  %vm67 = vweird.f32 %v60
  %vm68 = vmor %vm66, %vm67
  %v69 = vsel %vm68, %v60, %v65
  %v70 = vmul.f32 %v36, %v59
  %v71 = vmul.f32 %v37, %v69
  %v72 = vld [vmem:[%s1] sm:$0x1]
  %v74 = vperm.slane %v72, 0
  %v76 = vmul.f32 %v70, %v74
  %v77 = vmul.f32 %v71, %v74
  %v78 = vld [vmem:[%s2] sm:$0x1]
  %v80 = vperm.slane %v78, 0
  %v82 = vadd.f32 %v76, %v80
  %v83 = vadd.f32 %v77, %v80
  %v84 = vpack.c.bf16 %v83, %v82
  %v85 = vld [vmem:[%s3] sm:$0xff]
  %v86 = vld [vmem:[%s3 + $0x8] sm:$0xff]
  %v87 = vld [vmem:[%s3 + $0x10] sm:$0xff]
  %v88 = vld [vmem:[%s3 + $0x18] sm:$0xff]
  %v89 = vld [vmem:[%s3 + $0x20] sm:$0xff]
  %v90 = vld [vmem:[%s3 + $0x28] sm:$0xff]
  %v91 = vld [vmem:[%s3 + $0x30] sm:$0xff]
  %v92 = vld [vmem:[%s3 + $0x38] sm:$0xff]
  %v101 = vunpack.c.l.b16 %v85
  %v102 = vunpack.c.h.b16 %v85
  %v103 = vunpack.c.l.b16 %v86
  %v104 = vunpack.c.h.b16 %v86
  %v105 = vunpack.c.l.b16 %v87
  %v106 = vunpack.c.h.b16 %v87
  %v107 = vunpack.c.l.b16 %v88
  %v108 = vunpack.c.h.b16 %v88
  %v109 = vunpack.c.l.b16 %v89
  %v110 = vunpack.c.h.b16 %v89
  %v111 = vunpack.c.l.b16 %v90
  %v112 = vunpack.c.h.b16 %v90
  %v113 = vunpack.c.l.b16 %v91
  %v114 = vunpack.c.h.b16 %v91
  %v115 = vunpack.c.l.b16 %v92
  %v116 = vunpack.c.h.b16 %v92
  %v117 = vpack.c.b16 %v103, %v101
  %v118 = vpack.c.b16 %v104, %v102
  %v119 = vpack.c.b16 %v107, %v105
  %v120 = vpack.c.b16 %v108, %v106
  %v121 = vpack.c.b16 %v111, %v109
  %v122 = vpack.c.b16 %v112, %v110
  %v123 = vpack.c.b16 %v115, %v113
  %v124 = vpack.c.b16 %v116, %v114
  %v134 = vsel %vm20, %v84, 0
  %136 = vmatpush.bf16.msra.mxu0 0
  %137 = vmatpush.bf16.msra.mxu0 0
  %138 = vmatpush.bf16.msra.mxu0 0
  %139 = vmatpush.bf16.msra.mxu0 0
  %140 = vmatpush.bf16.msra.mxu0 %v123
  %141 = vmatpush.bf16.msra.mxu0 %v121
  %142 = vmatpush.bf16.msra.mxu0 %v119
  %143 = vmatpush.bf16.msra.mxu0 %v117
  %144 = vmatmul.bf16.gmra.mxu0 %v134
  %v145 = vpop.f32.mrf.mxu0
  %v146 = vadd.f32 0.0, %v145
  %v147 = vpop.f32.mrf.mxu0
  %v148 = vadd.f32 0.0, %v147
  %149 = vdwg.mxu0
  %150 = vmatpush.bf16.msra.mxu0 0
  %151 = vmatpush.bf16.msra.mxu0 0
  %152 = vmatpush.bf16.msra.mxu0 0
  %153 = vmatpush.bf16.msra.mxu0 0
  %154 = vmatpush.bf16.msra.mxu0 %v124
  %155 = vmatpush.bf16.msra.mxu0 %v122
  %156 = vmatpush.bf16.msra.mxu0 %v120
  %157 = vmatpush.bf16.msra.mxu0 %v118
  %158 = vmatmul.bf16.gmra.mxu0 %v134
  %v159 = vpop.f32.mrf.mxu0
  %v160 = vadd.f32 0.0, %v159
  %v161 = vpop.f32.mrf.mxu0
  %v162 = vadd.f32 0.0, %v161
  %163 = vdwg.mxu0
  %164 = vst [vmem:[%s4] sm:$0xff] %v146
  %165 = vst.msk [vmem:[%s4 + $0x8] sm:$0xff] %vm20, %v160
  %166 = vst [vmem:[%s4 + $0x10] sm:$0xff] %v148
  %167 = vst.msk [vmem:[%s4 + $0x18] sm:$0xff] %vm20, %v162
  // Predicated region
  $region18: #{gpt_forward.9} parent=0 // pred_check
    _
  $region19: #{gpt_forward.9} parent=0 // pred_check_branch
    %169 = sbr.rel (0) target = $region21
  $region20: #{gpt_forward.9} parent=0 // pred_region
    _
  $region21: #{gpt_forward.9} parent=0 // pred_fallthru
    _
  // Predicated region
  $region22: #{gpt_forward.9} parent=0 // pred_check
    _
  $region23: #{gpt_forward.9} parent=0 // pred_check_branch
    %171 = sbr.rel (0) target = $region25
  $region24: #{gpt_forward.9} parent=0 // pred_region
    _
  $region25: #{gpt_forward.9} parent=0 // pred_fallthru
    _

// kernel: gpt_forward.10
$region0: #{gpt_forward.10}
  #allocation0 [shape = 'u32[]', space=smem, size = 0x4, offset = 0x4, fixed_abs, tag = 'smem constant byte address 0x4 - core index']
  #allocation1 [shape = 'u32[72,128]{1,0:T(1,128)}', space=vmem, size = 0x9000, scoped, tag = 'internal scratch']
  #allocation2 [shape = 'f32[4,8,1]{2,1,0:T(8,128)}', space=vmem, size = 0x4000, scoped, tag = 'scratch operand']
  #allocation3 [shape = 'f32[4,8,1]{2,1,0:T(8,128)}', space=vmem, size = 0x4000, scoped, tag = 'scratch operand']
  #allocation4 [shape = 'f32[4,8,16]{2,1,0:T(8,128)}', space=vmem, size = 0x4000, scoped, tag = 'scratch operand']
  %s0 = inlined_call_operand.vmem [shape: f32[2,8,64], index: 0, kind: input, shape index: {}]
  %s1 = inlined_call_operand.vmem [shape: f32[2,8,64], index: 1, kind: input, shape index: {}]
  %s2 = inlined_call_operand.vmem [shape: f32[2,8,64], index: 2, kind: input, shape index: {}]
  %s3 = inlined_call_operand.vmem [shape: f32[2,8,64], index: 3, kind: output, shape index: {}]
  %s4 = sld [smem:[#allocation0]]
  $region57: #{gpt_forward.10} parent=0
    _
  %s6 = ssub.s32 1, %s4
  %s7 = scalar_select 0, %s6, %s4
  loop: start=0, step=1, limit=4
  $region2: #{gpt_forward.10} parent=0 // loop_pre_header
    _
  $region3: #{gpt_forward.10} parent=0 // loop_header
    %s9 = sphi 0, %s13
    %p10 = scmp.ge.s32.totalorder %s9, 4
    %s16 = sphi 0, %s35
    %s17 = sphi 0, %s31
    %s18 = sphi 0, %s27
    %s19 = sphi 0, %s16
    %s20 = sphi 0, %s17
    %s21 = sphi 0, %s18
    %s22 = sphi 0, %s19
    %s23 = sphi 0, %s20
    %s24 = sphi 0, %s21
    %s40 = sphi 0, %s42
    %s43 = sphi 0, %s40
    %s44 = sphi 0, %s43
    %s60 = sphi 0, %s44
    %s68 = sphi 0, %s70
    %s71 = sphi 0, %s68
    %s72 = sphi 0, %s71
    %s88 = sphi 0, %s72
    %s96 = sphi 0, %s98
    %s99 = sphi 0, %s96
    %s100 = sphi 0, %s99
    %s116 = sphi 0, %s100
    %s124 = sphi 0, %s126
    %s127 = sphi 0, %s124
    %s128 = sphi 0, %s127
    %s144 = sphi 0, %s128
  $region4: #{gpt_forward.10} parent=0 // loop_header_branch
    %12 = sbr.rel (%p10) target = $region8
  $region5: #{gpt_forward.10} parent=0 // loop_body
    %s14 = ssub.s32 %s9, 1
    %s15 = ssub.s32 %s9, 2
    %s25 = sadd.s32 1, %s18
    %p26 = scmp.ge.s32.totalorder %s25, 1
    %s27 = scalar_select %p26, 0, %s25
    %s28 = sadd.s32 1, %s17
    %s29 = scalar_select %p26, %s28, %s17
    %p30 = scmp.ge.s32.totalorder %s29, 1
    %s31 = scalar_select %p30, 0, %s29
    %s32 = sadd.s32 1, %s16
    %s33 = scalar_select %p30, %s32, %s16
    %p34 = scmp.ge.s32.totalorder %s33, 2
    %s35 = scalar_select %p34, 0, %s33
    %s36 = ssub.s32 %s16, %s35
    %s37 = ssub.s32 %s17, %s31
    %s38 = sor.u32 %s36, %s37
    %p39 = scmp.eq.s32.totalorder %s38, 0
    %s41 = sadd.s32 %s40, 1
    %s42 = scalar_select %p39, %s40, %s41
    %p45 = pneg %p39
    %p46 = scmp.eq.s32.totalorder %s9, 1
    %p47 = por %p45, %p46
    %p48 = scmp.ne.s32.totalorder %s40, %s43
    %p49 = scmp.eq.s32.totalorder %s9, 0
    %p50 = por %p48, %p49
    %p51 = scmp.ne.s32.totalorder %s40, %s43
    %p52 = scmp.eq.s32.totalorder %s14, 1
    %p53 = por %p51, %p52
    %p54 = scmp.ne.s32.totalorder %s43, %s44
    %p55 = scmp.eq.s32.totalorder %s14, 0
    %p56 = por %p54, %p55
    %p57 = scmp.ne.s32.totalorder %s43, %s44
    %p58 = scmp.eq.s32.totalorder %s15, 1
    %p59 = por %p57, %p58
    %p61 = scmp.ne.s32.totalorder %s44, %s60
    %p62 = scmp.eq.s32.totalorder %s15, 0
    %p63 = por %p61, %p62
    %s64 = ssub.s32 %s16, %s35
    %s65 = ssub.s32 %s18, %s27
    %s66 = sor.u32 %s64, %s65
    %p67 = scmp.eq.s32.totalorder %s66, 0
    %s69 = sadd.s32 %s68, 1
    %s70 = scalar_select %p67, %s68, %s69
    %p73 = pneg %p67
    %p74 = scmp.eq.s32.totalorder %s9, 1
    %p75 = por %p73, %p74
    %p76 = scmp.ne.s32.totalorder %s68, %s71
    %p77 = scmp.eq.s32.totalorder %s9, 0
    %p78 = por %p76, %p77
    %p79 = scmp.ne.s32.totalorder %s68, %s71
    %p80 = scmp.eq.s32.totalorder %s14, 1
    %p81 = por %p79, %p80
    %p82 = scmp.ne.s32.totalorder %s71, %s72
    %p83 = scmp.eq.s32.totalorder %s14, 0
    %p84 = por %p82, %p83
    %p85 = scmp.ne.s32.totalorder %s71, %s72
    %p86 = scmp.eq.s32.totalorder %s15, 1
    %p87 = por %p85, %p86
    %p89 = scmp.ne.s32.totalorder %s72, %s88
    %p90 = scmp.eq.s32.totalorder %s15, 0
    %p91 = por %p89, %p90
    %s92 = ssub.s32 %s16, %s35
    %s93 = ssub.s32 %s18, %s27
    %s94 = sor.u32 %s92, %s93
    %p95 = scmp.eq.s32.totalorder %s94, 0
    %s97 = sadd.s32 %s96, 1
    %s98 = scalar_select %p95, %s96, %s97
    %p101 = pneg %p95
    %p102 = scmp.eq.s32.totalorder %s9, 1
    %p103 = por %p101, %p102
    %p104 = scmp.ne.s32.totalorder %s96, %s99
    %p105 = scmp.eq.s32.totalorder %s9, 0
    %p106 = por %p104, %p105
    %p107 = scmp.ne.s32.totalorder %s96, %s99
    %p108 = scmp.eq.s32.totalorder %s14, 1
    %p109 = por %p107, %p108
    %p110 = scmp.ne.s32.totalorder %s99, %s100
    %p111 = scmp.eq.s32.totalorder %s14, 0
    %p112 = por %p110, %p111
    %p113 = scmp.ne.s32.totalorder %s99, %s100
    %p114 = scmp.eq.s32.totalorder %s15, 1
    %p115 = por %p113, %p114
    %p117 = scmp.ne.s32.totalorder %s100, %s116
    %p118 = scmp.eq.s32.totalorder %s15, 0
    %p119 = por %p117, %p118
    %s120 = ssub.s32 %s16, %s35
    %s121 = ssub.s32 %s17, %s31
    %s122 = sor.u32 %s120, %s121
    %p123 = scmp.eq.s32.totalorder %s122, 0
    %s125 = sadd.s32 %s124, 1
    %s126 = scalar_select %p123, %s124, %s125
    %p129 = pneg %p123
    %p130 = scmp.eq.s32.totalorder %s9, 1
    %p131 = por %p129, %p130
    %p132 = scmp.ne.s32.totalorder %s124, %s127
    %p133 = scmp.eq.s32.totalorder %s9, 0
    %p134 = por %p132, %p133
    %p135 = scmp.ne.s32.totalorder %s124, %s127
    %p136 = scmp.eq.s32.totalorder %s14, 1
    %p137 = por %p135, %p136
    %p138 = scmp.ne.s32.totalorder %s127, %s128
    %p139 = scmp.eq.s32.totalorder %s14, 0
    %p140 = por %p138, %p139
    %p141 = scmp.ne.s32.totalorder %s127, %s128
    %p142 = scmp.eq.s32.totalorder %s15, 1
    %p143 = por %p141, %p142
    %p145 = scmp.ne.s32.totalorder %s128, %s144
    %p146 = scmp.eq.s32.totalorder %s15, 0
    %p147 = por %p145, %p146
    %p148 = scmp.le.s32.totalorder 1, %s9
    %p149 = scmp.lt.s32.totalorder %s9, 3
    %p150 = pnand %p148, %p149
    %p151 = pneg %p150
    // Predicated region
    $region9: #{gpt_forward.10} parent=5 // pred_check
      _
    $region10: #{gpt_forward.10} parent=5 // pred_check_branch
      %153 = sbr.rel (%p150) target = $region12
    $region11: #{gpt_forward.10} parent=5 // pred_region
      %s154 = ssub.s32 %s9, 1
    $region12: #{gpt_forward.10} parent=5 // pred_fallthru
      _
    %p155 = scmp.lt.s32.totalorder %s9, 2
    // Predicated region
    $region13: #{gpt_forward.10} parent=5 // pred_check
      %p156 = pneg %p155
    $region14: #{gpt_forward.10} parent=5 // pred_check_branch
      %158 = sbr.rel (%p156) target = $region16
    $region15: #{gpt_forward.10} parent=5 // pred_region
      // Predicated region
      $region17: #{gpt_forward.10} parent=15 // pred_check
        %p159 = pneg %p50
      $region18: #{gpt_forward.10} parent=15 // pred_check_branch
        %161 = sbr.rel (%p159) target = $region20
      $region19: #{gpt_forward.10} parent=15 // pred_region
        %p162 = scmp.lt.s32.totalorder %s16, 1
        %s163 = scalar_select %p162, %s16, 1
        %p164 = scmp.lt.s32.totalorder %s17, 0
        %s165 = scalar_select %p164, %s17, 0
        %s166 = sadd.s32 %s165, %s163
        %s167 = smul.addr %s166, 8
        %s168 = scalar_lea.vmem %s0, %s167
      $region20: #{gpt_forward.10} parent=15 // pred_fallthru
        _
      // Predicated region
      $region21: #{gpt_forward.10} parent=15 // pred_check
        %p169 = pneg %p78
      $region22: #{gpt_forward.10} parent=15 // pred_check_branch
        %171 = sbr.rel (%p169) target = $region24
      $region23: #{gpt_forward.10} parent=15 // pred_region
        %p172 = scmp.lt.s32.totalorder %s16, 1
        %s173 = scalar_select %p172, %s16, 1
        %p174 = scmp.lt.s32.totalorder %s18, 0
        %s175 = scalar_select %p174, %s18, 0
        %s176 = sadd.s32 %s175, %s173
        %s177 = smul.addr %s176, 8
        %s178 = scalar_lea.vmem %s1, %s177
      $region24: #{gpt_forward.10} parent=15 // pred_fallthru
        _
      // Predicated region
      $region25: #{gpt_forward.10} parent=15 // pred_check
        %p179 = pneg %p106
      $region26: #{gpt_forward.10} parent=15 // pred_check_branch
        %181 = sbr.rel (%p179) target = $region28
      $region27: #{gpt_forward.10} parent=15 // pred_region
        %p182 = scmp.lt.s32.totalorder %s16, 1
        %s183 = scalar_select %p182, %s16, 1
        %p184 = scmp.lt.s32.totalorder %s18, 0
        %s185 = scalar_select %p184, %s18, 0
        %s186 = sadd.s32 %s185, %s183
        %s187 = smul.addr %s186, 8
        %s188 = scalar_lea.vmem %s2, %s187
      $region28: #{gpt_forward.10} parent=15 // pred_fallthru
        _
    $region16: #{gpt_forward.10} parent=5 // pred_fallthru
      _
    %p189 = scmp.le.s32.totalorder 1, %s9
    %p190 = scmp.lt.s32.totalorder %s9, 3
    %p191 = pnand %p189, %p190
    %p192 = pneg %p191
    // Predicated region
    $region29: #{gpt_forward.10} parent=5 // pred_check
      _
    $region30: #{gpt_forward.10} parent=5 // pred_check_branch
      %194 = sbr.rel (%p191) target = $region32
    $region31: #{gpt_forward.10} parent=5 // pred_region
      %s195 = ssub.s32 %s9, 1
      %p196 = scmp.lt.s32.totalorder %s19, 1
      %s197 = scalar_select %p196, %s19, 1
      %p198 = scmp.lt.s32.totalorder %s20, 0
      %s199 = scalar_select %p198, %s20, 0
      %s200 = sadd.s32 %s199, %s197
      %s201 = smul.addr %s200, 8
      %s202 = scalar_lea.vmem %s0, %s201
      %p203 = pneg %p56
      %p204 = pneg %p53
      %p205 = scmp.lt.s32.totalorder %s19, 1
      %s206 = scalar_select %p205, %s19, 1
      %p207 = scmp.lt.s32.totalorder %s21, 0
      %s208 = scalar_select %p207, %s21, 0
      %s209 = sadd.s32 %s208, %s206
      %s210 = smul.addr %s209, 8
      %s211 = scalar_lea.vmem %s1, %s210
      %p212 = pneg %p84
      %p213 = pneg %p81
      %p214 = scmp.lt.s32.totalorder %s19, 1
      %s215 = scalar_select %p214, %s19, 1
      %p216 = scmp.lt.s32.totalorder %s21, 0
      %s217 = scalar_select %p216, %s21, 0
      %s218 = sadd.s32 %s217, %s215
      %s219 = smul.addr %s218, 8
      %s220 = scalar_lea.vmem %s2, %s219
      %p221 = pneg %p112
      %p222 = pneg %p109
      %p223 = pneg %p140
      %p224 = pneg %p137
      %p225 = scmp.lt.s32.totalorder %s19, 1
      %s226 = scalar_select %p225, %s19, 1
      %p227 = scmp.lt.s32.totalorder %s20, 0
      %s228 = scalar_select %p227, %s20, 0
      %s229 = sadd.s32 %s228, %s226
      %s230 = smul.addr %s229, 8
      %s231 = scalar_lea.vmem %s3, %s230
      %p232 = scmp.lt.s32.totalorder %s19, 1
      %s233 = scalar_select %p232, %s19, 1
      %p234 = scmp.lt.s32.totalorder %s20, 0
      %s235 = scalar_select %p234, %s20, 0
      %s236 = sadd.s32 %s235, %s233
      %s237 = smul.addr %s236, 8
      %s238 = scalar_lea.vmem %s0, %s237
      %p239 = scmp.lt.s32.totalorder %s19, 1
      %s240 = scalar_select %p239, %s19, 1
      %p241 = scmp.lt.s32.totalorder %s21, 0
      %s242 = scalar_select %p241, %s21, 0
      %s243 = sadd.s32 %s242, %s240
      %s244 = smul.addr %s243, 8
      %s245 = scalar_lea.vmem %s1, %s244
      %p246 = scmp.lt.s32.totalorder %s19, 1
      %s247 = scalar_select %p246, %s19, 1
      %p248 = scmp.lt.s32.totalorder %s21, 0
      %s249 = scalar_select %p248, %s21, 0
      %s250 = sadd.s32 %s249, %s247
      %s251 = smul.addr %s250, 8
      %s252 = scalar_lea.vmem %s2, %s251
      %p253 = scmp.lt.s32.totalorder %s19, 1
      %s254 = scalar_select %p253, %s19, 1
      %p255 = scmp.lt.s32.totalorder %s20, 0
      %s256 = scalar_select %p255, %s20, 0
      %s257 = sadd.s32 %s256, %s254
      %s258 = smul.addr %s257, 8
      %s259 = scalar_lea.vmem %s3, %s258
      %p261 = scmp.eq.s32.totalorder %s21, 0
      // Predicated region
      $region33: #{gpt_forward.10} parent=31 // pred_check
        %p262 = pneg %p261
      $region34: #{gpt_forward.10} parent=31 // pred_check_branch
        %264 = sbr.rel (%p262) target = $region36
      $region35: #{gpt_forward.10} parent=31 // pred_region
        %vm265 = vcmask 7168
        %266 = vst.msk [vmem:[#allocation2] sm:$0xff] %vm265, -1e+30
        %267 = vst.msk [vmem:[#allocation2 + $0x8] sm:$0xff] %vm265, -1e+30
        %268 = vst.msk [vmem:[#allocation2 + $0x10] sm:$0xff] %vm265, -1e+30
        %269 = vst.msk [vmem:[#allocation2 + $0x18] sm:$0xff] %vm265, -1e+30
        %270 = vst.msk [vmem:[#allocation3] sm:$0xff] %vm265, 0.0
        %271 = vst.msk [vmem:[#allocation3 + $0x8] sm:$0xff] %vm265, 0.0
        %272 = vst.msk [vmem:[#allocation3 + $0x10] sm:$0xff] %vm265, 0.0
        %273 = vst.msk [vmem:[#allocation3 + $0x18] sm:$0xff] %vm265, 0.0
        %vm274 = vcmask 130048
        %275 = vst.msk [vmem:[#allocation4] sm:$0xff] %vm274, 0.0
        %276 = vst.msk [vmem:[#allocation4 + $0x8] sm:$0xff] %vm274, 0.0
        %277 = vst.msk [vmem:[#allocation4 + $0x10] sm:$0xff] %vm274, 0.0
        %278 = vst.msk [vmem:[#allocation4 + $0x18] sm:$0xff] %vm274, 0.0
      $region36: #{gpt_forward.10} parent=31 // pred_fallthru
        _
      %s279 = smul.u32 %s21, 8
      %s280 = smul.u32 %s20, 8
      %s281 = sadd.s32 %s280, 7
      %p282 = scmp.le.s32.totalorder %s279, %s281
      // Predicated region
      $region37: #{gpt_forward.10} parent=31 // pred_check
        %p283 = pneg %p282
      $region38: #{gpt_forward.10} parent=31 // pred_check_branch
        %285 = sbr.rel (%p283) target = $region40
      $region39: #{gpt_forward.10} parent=31 // pred_region
        %v286 = vlaneseq
        %v287 = vshrl.u32 %v286, 7
        %v288 = vstv %s280
        %v289 = vadd.s32 %v288, %v287
        %v290 = vlaneseq
        %v291 = vand.u32 %v290, 127
        %v292 = vstv %s279
        %v293 = vadd.s32 %v292, %v291
        %vm294 = vcmp.le.s32.totalorder %v293, %v289
        %v295 = vld [vmem:[%s238] sm:$0xff]
        %v296 = vld [vmem:[%s245] sm:$0xff]
        %v297 = vld [vmem:[%s252] sm:$0xff]
        %v298 = vmul.f32 %v295, 0.25
        %v299 = vpack.c.bf16 %v298, %v298
        %v300 = vpack.c.bf16 %v296, %v296
        %v301 = vpack.c.bf16 %v297, %v297
        %vm302 = vcmask 130048
        %v304 = vsel %vm302, %v299, 0
        %v307 = vsel %vm302, %v300, 0
        %309 = vmatpush.bf16.xpose.msra.mxu0 0
        %310 = vmatpush.bf16.xpose.msra.mxu0 0
        %311 = vmatpush.bf16.xpose.msra.mxu0 0
        %312 = vmatpush.bf16.xpose.msra.mxu0 0
        %313 = vmatpush.bf16.xpose.msra.mxu0 0
        %314 = vmatpush.bf16.xpose.msra.mxu0 0
        %315 = vmatpush.bf16.xpose.msra.mxu0 0
        %316 = vmatpush.bf16.xpose.msra.mxu0 %v307
        %317 = vmatmul.bf16.gmra.mxu0 %v304
        %v318 = vpop.f32.mrf.mxu0
        %v319 = vadd.f32 0.0, %v318
        %v320 = vpop.f32.mrf.mxu0
        %321 = vdwg.mxu0
        %v322 = vsel %vm294, %v319, -1e+30
        %v323 = vld [vmem:[#allocation2] sm:$0xff]
        %vm324 = vcmask 64512
        %v325 = vsel %vm324, %v322, -inf
        %326 = vmax.xlane.f32.xlu0 %v325
        %v327 = vpop.xlane.xlu0 %326
        %v328 = vmax.f32 %v323, %v327
        %330 = vset.pattern.permute.xlu0 0
        %331 = vperm.xlu0 %330, %v328
        %v332 = vpop.permute.xlu0 %331
        %v334 = vsub.f32 %v322, %v332
        %v335 = vmul.f32 %v334, 1.442695
        %v336 = vpow.pop %v335
        %v337 = vsel %vm294, %v336, 0.0
        %v338 = vsub.f32 %v323, %v328
        %v339 = vmul.f32 %v338, 1.442695
        %v340 = vpow.pop %v339
        %v341 = vld [vmem:[#allocation3] sm:$0xff]
        %v342 = vmul.f32 %v340, %v341
        %v343 = vsel %vm324, %v337, 0.0
        %344 = vadd.xlane.f32.xlu0 %v343
        %v345 = vpop.xlane.xlu0 %344
        %v346 = vadd.f32 %v342, %v345
        %vm347 = vcmask 7168
        %348 = vst.msk [vmem:[#allocation3] sm:$0xff] %vm347, %v346
        %v349 = vld [vmem:[#allocation4] sm:$0xff]
        %351 = vset.pattern.permute.xlu0 0
        %352 = vperm.xlu0 %351, %v340
        %v353 = vpop.permute.xlu0 %352
        %v355 = vmul.f32 %v353, %v349
        %v356 = vpack.c.bf16 %v337, %v337
        %v358 = vsel %vm324, %v356, 0
        %vm360 = vcmask 1043456
        %v362 = vsel %vm360, %v301, 0
        %364 = vmatpush.bf16.msra.mxu0 0
        %365 = vmatpush.bf16.msra.mxu0 0
        %366 = vmatpush.bf16.msra.mxu0 0
        %367 = vmatpush.bf16.msra.mxu0 0
        %368 = vmatpush.bf16.msra.mxu0 0
        %369 = vmatpush.bf16.msra.mxu0 0
        %370 = vmatpush.bf16.msra.mxu0 0
        %371 = vmatpush.bf16.msra.mxu0 %v362
        %372 = vmatmul.bf16.gmra.mxu0 %v358
        %v373 = vpop.f32.mrf.mxu0
        %v374 = vadd.f32 0.0, %v373
        %v375 = vpop.f32.mrf.mxu0
        %376 = vdwg.mxu0
        %v377 = vadd.f32 %v355, %v374
        %378 = vst.msk [vmem:[#allocation4] sm:$0xff] %vm302, %v377
        %379 = vst.msk [vmem:[#allocation2] sm:$0xff] %vm347, %v328
        %381 = vrot.lane.b32.xlu0 %v299, 112
        %v382 = vpop.permute.xlu0 %381
        %384 = vrot.lane.b32.xlu0 %v300, 112
        %v385 = vpop.permute.xlu0 %384
        %v387 = vsel %vm302, %v382, 0
        %v390 = vsel %vm302, %v385, 0
        %392 = vmatpush.bf16.xpose.msra.mxu0 0
        %393 = vmatpush.bf16.xpose.msra.mxu0 0
        %394 = vmatpush.bf16.xpose.msra.mxu0 0
        %395 = vmatpush.bf16.xpose.msra.mxu0 0
        %396 = vmatpush.bf16.xpose.msra.mxu0 0
        %397 = vmatpush.bf16.xpose.msra.mxu0 0
        %398 = vmatpush.bf16.xpose.msra.mxu0 0
        %399 = vmatpush.bf16.xpose.msra.mxu0 %v390
        %400 = vmatmul.bf16.gmra.mxu0 %v387
        %v401 = vpop.f32.mrf.mxu0
        %v402 = vadd.f32 0.0, %v401
        %v403 = vpop.f32.mrf.mxu0
        %404 = vdwg.mxu0
        %v405 = vsel %vm294, %v402, -1e+30
        %s406 = scalar_lea.vmem [#allocation2], 8
        %v407 = vld [vmem:[%s406] sm:$0xff]
        %v408 = vsel %vm324, %v405, -inf
        %409 = vmax.xlane.f32.xlu0 %v408
        %v410 = vpop.xlane.xlu0 %409
        %v411 = vmax.f32 %v407, %v410
        %413 = vset.pattern.permute.xlu0 0
        %414 = vperm.xlu0 %413, %v411
        %v415 = vpop.permute.xlu0 %414
        %v417 = vsub.f32 %v405, %v415
        %v418 = vmul.f32 %v417, 1.442695
        %v419 = vpow.pop %v418
        %v420 = vsel %vm294, %v419, 0.0
        %v421 = vsub.f32 %v407, %v411
        %v422 = vmul.f32 %v421, 1.442695
        %v423 = vpow.pop %v422
        %s424 = scalar_lea.vmem [#allocation3], 8
        %v425 = vld [vmem:[%s424] sm:$0xff]
        %v426 = vmul.f32 %v423, %v425
        %v427 = vsel %vm324, %v420, 0.0
        %428 = vadd.xlane.f32.xlu0 %v427
        %v429 = vpop.xlane.xlu0 %428
        %v430 = vadd.f32 %v426, %v429
        %431 = vst.msk [vmem:[%s424] sm:$0xff] %vm347, %v430
        %s432 = scalar_lea.vmem [#allocation4], 8
        %v433 = vld [vmem:[%s432] sm:$0xff]
        %435 = vset.pattern.permute.xlu0 0
        %436 = vperm.xlu0 %435, %v423
        %v437 = vpop.permute.xlu0 %436
        %v439 = vmul.f32 %v437, %v433
        %v440 = vpack.c.bf16 %v420, %v420
        %442 = vrot.lane.b32.xlu0 %v301, 112
        %v443 = vpop.permute.xlu0 %442
        %v445 = vsel %vm324, %v440, 0
        %v448 = vsel %vm360, %v443, 0
        %450 = vmatpush.bf16.msra.mxu0 0
        %451 = vmatpush.bf16.msra.mxu0 0
        %452 = vmatpush.bf16.msra.mxu0 0
        %453 = vmatpush.bf16.msra.mxu0 0
        %454 = vmatpush.bf16.msra.mxu0 0
        %455 = vmatpush.bf16.msra.mxu0 0
        %456 = vmatpush.bf16.msra.mxu0 0
        %457 = vmatpush.bf16.msra.mxu0 %v448
        %458 = vmatmul.bf16.gmra.mxu0 %v445
        %v459 = vpop.f32.mrf.mxu0
        %v460 = vadd.f32 0.0, %v459
        %v461 = vpop.f32.mrf.mxu0
        %462 = vdwg.mxu0
        %v463 = vadd.f32 %v439, %v460
        %464 = vst.msk [vmem:[%s432] sm:$0xff] %vm302, %v463
        %465 = vst.msk [vmem:[%s406] sm:$0xff] %vm347, %v411
        %466 = vrot.lane.b32.xlu0 %v299, 96
        %v467 = vpop.permute.xlu0 %466
        %468 = vrot.lane.b32.xlu0 %v300, 96
        %v469 = vpop.permute.xlu0 %468
        %v471 = vsel %vm302, %v467, 0
        %v474 = vsel %vm302, %v469, 0
        %476 = vmatpush.bf16.xpose.msra.mxu0 0
        %477 = vmatpush.bf16.xpose.msra.mxu0 0
        %478 = vmatpush.bf16.xpose.msra.mxu0 0
        %479 = vmatpush.bf16.xpose.msra.mxu0 0
        %480 = vmatpush.bf16.xpose.msra.mxu0 0
        %481 = vmatpush.bf16.xpose.msra.mxu0 0
        %482 = vmatpush.bf16.xpose.msra.mxu0 0
        %483 = vmatpush.bf16.xpose.msra.mxu0 %v474
        %484 = vmatmul.bf16.gmra.mxu0 %v471
        %v485 = vpop.f32.mrf.mxu0
        %v486 = vadd.f32 0.0, %v485
        %v487 = vpop.f32.mrf.mxu0
        %488 = vdwg.mxu0
        %v489 = vsel %vm294, %v486, -1e+30
        %s490 = scalar_lea.vmem [#allocation2], 16
        %v491 = vld [vmem:[%s490] sm:$0xff]
        %v492 = vsel %vm324, %v489, -inf
        %493 = vmax.xlane.f32.xlu0 %v492
        %v494 = vpop.xlane.xlu0 %493
        %v495 = vmax.f32 %v491, %v494
        %497 = vset.pattern.permute.xlu0 0
        %498 = vperm.xlu0 %497, %v495
        %v499 = vpop.permute.xlu0 %498
        %v501 = vsub.f32 %v489, %v499
        %v502 = vmul.f32 %v501, 1.442695
        %v503 = vpow.pop %v502
        %v504 = vsel %vm294, %v503, 0.0
        %v505 = vsub.f32 %v491, %v495
        %v506 = vmul.f32 %v505, 1.442695
        %v507 = vpow.pop %v506
        %s508 = scalar_lea.vmem [#allocation3], 16
        %v509 = vld [vmem:[%s508] sm:$0xff]
        %v510 = vmul.f32 %v507, %v509
        %v511 = vsel %vm324, %v504, 0.0
        %512 = vadd.xlane.f32.xlu0 %v511
        %v513 = vpop.xlane.xlu0 %512
        %v514 = vadd.f32 %v510, %v513
        %515 = vst.msk [vmem:[%s508] sm:$0xff] %vm347, %v514
        %s516 = scalar_lea.vmem [#allocation4], 16
        %v517 = vld [vmem:[%s516] sm:$0xff]
        %519 = vset.pattern.permute.xlu0 0
        %520 = vperm.xlu0 %519, %v507
        %v521 = vpop.permute.xlu0 %520
        %v523 = vmul.f32 %v521, %v517
        %v524 = vpack.c.bf16 %v504, %v504
        %525 = vrot.lane.b32.xlu0 %v301, 96
        %v526 = vpop.permute.xlu0 %525
        %v528 = vsel %vm324, %v524, 0
        %v531 = vsel %vm360, %v526, 0
        %533 = vmatpush.bf16.msra.mxu0 0
        %534 = vmatpush.bf16.msra.mxu0 0
        %535 = vmatpush.bf16.msra.mxu0 0
        %536 = vmatpush.bf16.msra.mxu0 0
        %537 = vmatpush.bf16.msra.mxu0 0
        %538 = vmatpush.bf16.msra.mxu0 0
        %539 = vmatpush.bf16.msra.mxu0 0
        %540 = vmatpush.bf16.msra.mxu0 %v531
        %541 = vmatmul.bf16.gmra.mxu0 %v528
        %v542 = vpop.f32.mrf.mxu0
        %v543 = vadd.f32 0.0, %v542
        %v544 = vpop.f32.mrf.mxu0
        %545 = vdwg.mxu0
        %v546 = vadd.f32 %v523, %v543
        %547 = vst.msk [vmem:[%s516] sm:$0xff] %vm302, %v546
        %548 = vst.msk [vmem:[%s490] sm:$0xff] %vm347, %v495
        %549 = vrot.lane.b32.xlu0 %v299, 80
        %v550 = vpop.permute.xlu0 %549
        %551 = vrot.lane.b32.xlu0 %v300, 80
        %v552 = vpop.permute.xlu0 %551
        %v554 = vsel %vm302, %v550, 0
        %v557 = vsel %vm302, %v552, 0
        %559 = vmatpush.bf16.xpose.msra.mxu0 0
        %560 = vmatpush.bf16.xpose.msra.mxu0 0
        %561 = vmatpush.bf16.xpose.msra.mxu0 0
        %562 = vmatpush.bf16.xpose.msra.mxu0 0
        %563 = vmatpush.bf16.xpose.msra.mxu0 0
        %564 = vmatpush.bf16.xpose.msra.mxu0 0
        %565 = vmatpush.bf16.xpose.msra.mxu0 0
        %566 = vmatpush.bf16.xpose.msra.mxu0 %v557
        %567 = vmatmul.bf16.gmra.mxu0 %v554
        %v568 = vpop.f32.mrf.mxu0
        %v569 = vadd.f32 0.0, %v568
        %v570 = vpop.f32.mrf.mxu0
        %571 = vdwg.mxu0
        %v572 = vsel %vm294, %v569, -1e+30
        %s573 = scalar_lea.vmem [#allocation2], 24
        %v574 = vld [vmem:[%s573] sm:$0xff]
        %v575 = vsel %vm324, %v572, -inf
        %576 = vmax.xlane.f32.xlu0 %v575
        %v577 = vpop.xlane.xlu0 %576
        %v578 = vmax.f32 %v574, %v577
        %580 = vset.pattern.permute.xlu0 0
        %581 = vperm.xlu0 %580, %v578
        %v582 = vpop.permute.xlu0 %581
        %v584 = vsub.f32 %v572, %v582
        %v585 = vmul.f32 %v584, 1.442695
        %v586 = vpow.pop %v585
        %v587 = vsel %vm294, %v586, 0.0
        %v588 = vsub.f32 %v574, %v578
        %v589 = vmul.f32 %v588, 1.442695
        %v590 = vpow.pop %v589
        %s591 = scalar_lea.vmem [#allocation3], 24
        %v592 = vld [vmem:[%s591] sm:$0xff]
        %v593 = vmul.f32 %v590, %v592
        %v594 = vsel %vm324, %v587, 0.0
        %595 = vadd.xlane.f32.xlu0 %v594
        %v596 = vpop.xlane.xlu0 %595
        %v597 = vadd.f32 %v593, %v596
        %598 = vst.msk [vmem:[%s591] sm:$0xff] %vm347, %v597
        %s599 = scalar_lea.vmem [#allocation4], 24
        %v600 = vld [vmem:[%s599] sm:$0xff]
        %602 = vset.pattern.permute.xlu0 0
        %603 = vperm.xlu0 %602, %v590
        %v604 = vpop.permute.xlu0 %603
        %v606 = vmul.f32 %v604, %v600
        %v607 = vpack.c.bf16 %v587, %v587
        %608 = vrot.lane.b32.xlu0 %v301, 80
        %v609 = vpop.permute.xlu0 %608
        %v611 = vsel %vm324, %v607, 0
        %v614 = vsel %vm360, %v609, 0
        %616 = vmatpush.bf16.msra.mxu0 0
        %617 = vmatpush.bf16.msra.mxu0 0
        %618 = vmatpush.bf16.msra.mxu0 0
        %619 = vmatpush.bf16.msra.mxu0 0
        %620 = vmatpush.bf16.msra.mxu0 0
        %621 = vmatpush.bf16.msra.mxu0 0
        %622 = vmatpush.bf16.msra.mxu0 0
        %623 = vmatpush.bf16.msra.mxu0 %v614
        %624 = vmatmul.bf16.gmra.mxu0 %v611
        %v625 = vpop.f32.mrf.mxu0
        %v626 = vadd.f32 0.0, %v625
        %v627 = vpop.f32.mrf.mxu0
        %628 = vdwg.mxu0
        %v629 = vadd.f32 %v606, %v626
        %630 = vst.msk [vmem:[%s599] sm:$0xff] %vm302, %v629
        %631 = vst.msk [vmem:[%s573] sm:$0xff] %vm347, %v578
      $region40: #{gpt_forward.10} parent=31 // pred_fallthru
        _
      // Predicated region
      $region41: #{gpt_forward.10} parent=31 // pred_check
        %p632 = pneg %p261
      $region42: #{gpt_forward.10} parent=31 // pred_check_branch
        %634 = sbr.rel (%p632) target = $region44
      $region43: #{gpt_forward.10} parent=31 // pred_region
        %v635 = vld [vmem:[#allocation3] sm:$0xff]
        %v636 = vrcp.pop %v635
        %v637 = vld [vmem:[#allocation4] sm:$0xff]
        %639 = vset.pattern.permute.xlu0 0
        %640 = vperm.xlu0 %639, %v636
        %v641 = vpop.permute.xlu0 %640
        %v643 = vmul.f32 %v637, %v641
        %s644 = scalar_lea.vmem [#allocation3], 8
        %v645 = vld [vmem:[%s644] sm:$0xff]
        %v646 = vrcp.pop %v645
        %s647 = scalar_lea.vmem [#allocation4], 8
        %v648 = vld [vmem:[%s647] sm:$0xff]
        %650 = vset.pattern.permute.xlu0 0
        %651 = vperm.xlu0 %650, %v646
        %v652 = vpop.permute.xlu0 %651
        %v654 = vmul.f32 %v648, %v652
        %s655 = scalar_lea.vmem [#allocation3], 16
        %v656 = vld [vmem:[%s655] sm:$0xff]
        %v657 = vrcp.pop %v656
        %s658 = scalar_lea.vmem [#allocation4], 16
        %v659 = vld [vmem:[%s658] sm:$0xff]
        %661 = vset.pattern.permute.xlu0 0
        %662 = vperm.xlu0 %661, %v657
        %v663 = vpop.permute.xlu0 %662
        %v665 = vmul.f32 %v659, %v663
        %s666 = scalar_lea.vmem [#allocation3], 24
        %v667 = vld [vmem:[%s666] sm:$0xff]
        %v668 = vrcp.pop %v667
        %s669 = scalar_lea.vmem [#allocation4], 24
        %v670 = vld [vmem:[%s669] sm:$0xff]
        %672 = vset.pattern.permute.xlu0 0
        %673 = vperm.xlu0 %672, %v668
        %v674 = vpop.permute.xlu0 %673
        %v676 = vmul.f32 %v670, %v674
        %678 = vrot.lane.b32.xlu0 %v654, 16
        %v679 = vpop.permute.xlu0 %678
        %682 = vrot.lane.b32.xlu0 %v665, 32
        %v683 = vpop.permute.xlu0 %682
        %686 = vrot.lane.b32.xlu0 %v676, 48
        %v687 = vpop.permute.xlu0 %686
        %vm689 = vcmask 130048
        %v690 = vsel %vm689, %v643, %v679
        %vm691 = vcmask 261120
        %v692 = vsel %vm691, %v690, %v683
        %vm693 = vcmask 392192
        %v694 = vsel %vm693, %v692, %v687
        %vm695 = vcmask 523264
        %696 = vst.msk [vmem:[%s259] sm:$0xff] %vm695, %v694
      $region44: #{gpt_forward.10} parent=31 // pred_fallthru
        _
      %p697 = scmp.lt.s32.totalorder %s19, 1
      %s698 = scalar_select %p697, %s19, 1
      %p699 = scmp.lt.s32.totalorder %s20, 0
      %s700 = scalar_select %p699, %s20, 0
      %s701 = sadd.s32 %s700, %s698
      %s702 = smul.addr %s701, 8
      %s703 = scalar_lea.vmem %s3, %s702
      // Predicated region
      $region45: #{gpt_forward.10} parent=31 // pred_check
        %p704 = pneg %p137
      $region46: #{gpt_forward.10} parent=31 // pred_check_branch
        %706 = sbr.rel (%p704) target = $region48
      $region47: #{gpt_forward.10} parent=31 // pred_region
        _
      $region48: #{gpt_forward.10} parent=31 // pred_fallthru
        _
    $region32: #{gpt_forward.10} parent=5 // pred_fallthru
      _
    %p707 = scmp.le.s32.totalorder 2, %s9
    // Predicated region
    $region49: #{gpt_forward.10} parent=5 // pred_check
      %p708 = pneg %p707
    $region50: #{gpt_forward.10} parent=5 // pred_check_branch
      %710 = sbr.rel (%p708) target = $region52
    $region51: #{gpt_forward.10} parent=5 // pred_region
      %s711 = ssub.s32 %s9, 2
      // Predicated region
      $region53: #{gpt_forward.10} parent=51 // pred_check
        %p712 = pneg %p143
      $region54: #{gpt_forward.10} parent=51 // pred_check_branch
        %714 = sbr.rel (%p712) target = $region56
      $region55: #{gpt_forward.10} parent=51 // pred_region
        %p715 = scmp.lt.s32.totalorder %s22, 1
        %s716 = scalar_select %p715, %s22, 1
        %p717 = scmp.lt.s32.totalorder %s23, 0
        %s718 = scalar_select %p717, %s23, 0
        %s719 = sadd.s32 %s718, %s716
        %s720 = smul.addr %s719, 8
        %s721 = scalar_lea.vmem %s3, %s720
      $region56: #{gpt_forward.10} parent=51 // pred_fallthru
        _
    $region52: #{gpt_forward.10} parent=5 // pred_fallthru
      _
  $region6: #{gpt_forward.10} parent=0 // loop_footer
    %s13 = sadd.s32 1, %s9
  $region7: #{gpt_forward.10} parent=0 // loop_footer_branch
    %8 = sbr.rel target = $region3
  $region8: #{gpt_forward.10} parent=0 // loop_exit
    _

// kernel: gpt_forward.12
$region0: #{gpt_forward.12}
  #allocation0 [shape = 'u32[]', space=smem, size = 0x4, offset = 0x4, fixed_abs, tag = 'smem constant byte address 0x4 - core index']
  #allocation1 [shape = 'u32[72,128]{1,0:T(1,128)}', space=vmem, size = 0x9000, scoped, tag = 'internal scratch']
  #allocation2 [shape = 'f32[16,64]{1,0:T(8,128)}', space=vmem, size = 0x2000, scoped, tag = 'scratch operand']
  %s0 = inlined_call_operand.vmem [shape: f32[16,64], index: 0, kind: input, shape index: {}]
  %s1 = inlined_call_operand.vmem [shape: f32[1,64], index: 1, kind: input, shape index: {}]
  %s2 = inlined_call_operand.vmem [shape: f32[1,64], index: 2, kind: input, shape index: {}]
  %s3 = inlined_call_operand.vmem [shape: bf16[64,256], index: 3, kind: input, shape index: {}]
  %s4 = inlined_call_operand.vmem [shape: bf16[64,256], index: 4, kind: input, shape index: {}]
  %s5 = inlined_call_operand.vmem [shape: bf16[256,64], index: 5, kind: input, shape index: {}]
  %s6 = inlined_call_operand.vmem [shape: f32[16,64], index: 6, kind: output, shape index: {}]
  %s7 = sld [smem:[#allocation0]]
  $region42: #{gpt_forward.12} parent=0
    _
  %s9 = ssub.s32 1, %s7
  %s10 = scalar_select 0, %s9, %s7
  // Predicated region
  $region2: #{gpt_forward.12} parent=0 // pred_check
    _
  $region3: #{gpt_forward.12} parent=0 // pred_check_branch
    %12 = sbr.rel (0) target = $region5
  $region4: #{gpt_forward.12} parent=0 // pred_region
    _
  $region5: #{gpt_forward.12} parent=0 // pred_fallthru
    _
  // Predicated region
  $region6: #{gpt_forward.12} parent=0 // pred_check
    _
  $region7: #{gpt_forward.12} parent=0 // pred_check_branch
    %14 = sbr.rel (0) target = $region9
  $region8: #{gpt_forward.12} parent=0 // pred_region
    _
  $region9: #{gpt_forward.12} parent=0 // pred_fallthru
    _
  // Predicated region
  $region10: #{gpt_forward.12} parent=0 // pred_check
    _
  $region11: #{gpt_forward.12} parent=0 // pred_check_branch
    %16 = sbr.rel (0) target = $region13
  $region12: #{gpt_forward.12} parent=0 // pred_region
    _
  $region13: #{gpt_forward.12} parent=0 // pred_fallthru
    _
  // Predicated region
  $region14: #{gpt_forward.12} parent=0 // pred_check
    _
  $region15: #{gpt_forward.12} parent=0 // pred_check_branch
    %18 = sbr.rel (0) target = $region17
  $region16: #{gpt_forward.12} parent=0 // pred_region
    _
  $region17: #{gpt_forward.12} parent=0 // pred_fallthru
    _
  // Predicated region
  $region18: #{gpt_forward.12} parent=0 // pred_check
    _
  $region19: #{gpt_forward.12} parent=0 // pred_check_branch
    %20 = sbr.rel (0) target = $region21
  $region20: #{gpt_forward.12} parent=0 // pred_region
    _
  $region21: #{gpt_forward.12} parent=0 // pred_fallthru
    _
  // Predicated region
  $region22: #{gpt_forward.12} parent=0 // pred_check
    _
  $region23: #{gpt_forward.12} parent=0 // pred_check_branch
    %22 = sbr.rel (0) target = $region25
  $region24: #{gpt_forward.12} parent=0 // pred_region
    _
  $region25: #{gpt_forward.12} parent=0 // pred_fallthru
    _
  %p24 = scmp.eq.s32.totalorder 0, 0
  // Predicated region
  $region26: #{gpt_forward.12} parent=0 // pred_check
    %p25 = pneg %p24
  $region27: #{gpt_forward.12} parent=0 // pred_check_branch
    %27 = sbr.rel (%p25) target = $region29
  $region28: #{gpt_forward.12} parent=0 // pred_region
    %vm28 = vcmask 523264
    %29 = vst.msk [vmem:[#allocation2] sm:$0xff] %vm28, 0.0
    %30 = vst.msk [vmem:[#allocation2 + $0x8] sm:$0xff] %vm28, 0.0
  $region29: #{gpt_forward.12} parent=0 // pred_fallthru
    _
  %v31 = vld [vmem:[%s0] sm:$0xff]
  %v32 = vld [vmem:[%s0 + $0x8] sm:$0xff]
  %vm33 = vcmask 523264
  %v34 = vsel %vm33, %v31, 0.0
  %35 = vadd.xlane.f32.xlu0 %v34
  %v36 = vpop.xlane.xlu0 %35
  %v37 = vsel %vm33, %v32, 0.0
  %38 = vadd.xlane.f32.xlu0 %v37
  %v39 = vpop.xlane.xlu0 %38
  %v40 = vrcp.pop 64.0
  %v41 = vmul.f32 64.0, %v40
  %v42 = vsub.f32 1.0, %v41
  %v43 = vmul.f32 %v40, %v42
  %v44 = vadd.f32 %v40, %v43
  %vm45 = vweird.f32 %v40
  %v46 = vsel %vm45, %v40, %v44
  %v47 = vmul.f32 %v36, %v46
  %v48 = vmul.f32 %v39, %v46
  %v49 = vsub.f32 %v31, %v47
  %v50 = vsub.f32 %v32, %v48
  %v51 = vmul.f32 %v49, %v49
  %v52 = vmul.f32 %v50, %v50
  %v53 = vsel %vm33, %v51, 0.0
  %54 = vadd.xlane.f32.xlu0 %v53
  %v55 = vpop.xlane.xlu0 %54
  %v56 = vsel %vm33, %v52, 0.0
  %57 = vadd.xlane.f32.xlu0 %v56
  %v58 = vpop.xlane.xlu0 %57
  %v59 = vmul.f32 %v55, %v46
  %v60 = vmul.f32 %v58, %v46
  %v61 = vadd.f32 %v59, 1e-05
  %v62 = vadd.f32 %v60, 1e-05
  %v63 = vrsqrt.pop %v61
  %v64 = vmul.f32 %v63, %v61
  %v65 = vmul.f32 %v64, %v63
  %v66 = vmul.f32 0.5, %v65
  %v67 = vsub.f32 1.5, %v66
  %v68 = vmul.f32 %v63, %v67
  %vm69 = vweird.f32 %v61
  %vm70 = vweird.f32 %v63
  %vm71 = vmor %vm69, %vm70
  %v72 = vsel %vm71, %v63, %v68
  %v73 = vrsqrt.pop %v62
  %v74 = vmul.f32 %v73, %v62
  %v75 = vmul.f32 %v74, %v73
  %v76 = vmul.f32 0.5, %v75
  %v77 = vsub.f32 1.5, %v76
  %v78 = vmul.f32 %v73, %v77
  %vm79 = vweird.f32 %v62
  %vm80 = vweird.f32 %v73
  %vm81 = vmor %vm79, %vm80
  %v82 = vsel %vm81, %v73, %v78
  %v83 = vmul.f32 %v49, %v72
  %v84 = vmul.f32 %v50, %v82
  %v85 = vld [vmem:[%s1] sm:$0x1]
  %v87 = vperm.slane %v85, 0
  %v89 = vmul.f32 %v83, %v87
  %v90 = vmul.f32 %v84, %v87
  %v91 = vld [vmem:[%s2] sm:$0x1]
  %v93 = vperm.slane %v91, 0
  %v95 = vadd.f32 %v89, %v93
  %v96 = vadd.f32 %v90, %v93
  %v97 = vpack.c.bf16 %v96, %v95
  %v98 = vld [vmem:[%s3] sm:$0xff]
  %v99 = vld [vmem:[%s3 + $0x8] sm:$0xff]
  %v100 = vld [vmem:[%s3 + $0x10] sm:$0xff]
  %v101 = vld [vmem:[%s3 + $0x18] sm:$0xff]
  %v102 = vld [vmem:[%s3 + $0x20] sm:$0xff]
  %v103 = vld [vmem:[%s3 + $0x28] sm:$0xff]
  %v104 = vld [vmem:[%s3 + $0x30] sm:$0xff]
  %v105 = vld [vmem:[%s3 + $0x38] sm:$0xff]
  %v114 = vunpack.c.l.b16 %v98
  %v115 = vunpack.c.h.b16 %v98
  %v116 = vunpack.c.l.b16 %v99
  %v117 = vunpack.c.h.b16 %v99
  %v118 = vunpack.c.l.b16 %v100
  %v119 = vunpack.c.h.b16 %v100
  %v120 = vunpack.c.l.b16 %v101
  %v121 = vunpack.c.h.b16 %v101
  %v122 = vunpack.c.l.b16 %v102
  %v123 = vunpack.c.h.b16 %v102
  %v124 = vunpack.c.l.b16 %v103
  %v125 = vunpack.c.h.b16 %v103
  %v126 = vunpack.c.l.b16 %v104
  %v127 = vunpack.c.h.b16 %v104
  %v128 = vunpack.c.l.b16 %v105
  %v129 = vunpack.c.h.b16 %v105
  %v130 = vpack.c.b16 %v116, %v114
  %v131 = vpack.c.b16 %v117, %v115
  %v132 = vpack.c.b16 %v120, %v118
  %v133 = vpack.c.b16 %v121, %v119
  %v134 = vpack.c.b16 %v124, %v122
  %v135 = vpack.c.b16 %v125, %v123
  %v136 = vpack.c.b16 %v128, %v126
  %v137 = vpack.c.b16 %v129, %v127
  %v147 = vsel %vm33, %v97, 0
  %149 = vmatpush.bf16.msra.mxu0 0
  %150 = vmatpush.bf16.msra.mxu0 0
  %151 = vmatpush.bf16.msra.mxu0 0
  %152 = vmatpush.bf16.msra.mxu0 0
  %153 = vmatpush.bf16.msra.mxu0 %v136
  %154 = vmatpush.bf16.msra.mxu0 %v134
  %155 = vmatpush.bf16.msra.mxu0 %v132
  %156 = vmatpush.bf16.msra.mxu0 %v130
  %157 = vmatmul.bf16.gmra.mxu0 %v147
  %v158 = vpop.f32.mrf.mxu0
  %v159 = vadd.f32 0.0, %v158
  %v160 = vpop.f32.mrf.mxu0
  %v161 = vadd.f32 0.0, %v160
  %162 = vdwg.mxu0
  %163 = vmatpush.bf16.msra.mxu0 0
  %164 = vmatpush.bf16.msra.mxu0 0
  %165 = vmatpush.bf16.msra.mxu0 0
  %166 = vmatpush.bf16.msra.mxu0 0
  %167 = vmatpush.bf16.msra.mxu0 %v137
  %168 = vmatpush.bf16.msra.mxu0 %v135
  %169 = vmatpush.bf16.msra.mxu0 %v133
  %170 = vmatpush.bf16.msra.mxu0 %v131
  %171 = vmatmul.bf16.gmra.mxu0 %v147
  %v172 = vpop.f32.mrf.mxu0
  %v173 = vadd.f32 0.0, %v172
  %v174 = vpop.f32.mrf.mxu0
  %v175 = vadd.f32 0.0, %v174
  %176 = vdwg.mxu0
  %v177 = vld [vmem:[%s4] sm:$0xff]
  %v178 = vld [vmem:[%s4 + $0x8] sm:$0xff]
  %v179 = vld [vmem:[%s4 + $0x10] sm:$0xff]
  %v180 = vld [vmem:[%s4 + $0x18] sm:$0xff]
  %v181 = vld [vmem:[%s4 + $0x20] sm:$0xff]
  %v182 = vld [vmem:[%s4 + $0x28] sm:$0xff]
  %v183 = vld [vmem:[%s4 + $0x30] sm:$0xff]
  %v184 = vld [vmem:[%s4 + $0x38] sm:$0xff]
  %v193 = vunpack.c.l.b16 %v177
  %v194 = vunpack.c.h.b16 %v177
  %v195 = vunpack.c.l.b16 %v178
  %v196 = vunpack.c.h.b16 %v178
  %v197 = vunpack.c.l.b16 %v179
  %v198 = vunpack.c.h.b16 %v179
  %v199 = vunpack.c.l.b16 %v180
  %v200 = vunpack.c.h.b16 %v180
  %v201 = vunpack.c.l.b16 %v181
  %v202 = vunpack.c.h.b16 %v181
  %v203 = vunpack.c.l.b16 %v182
  %v204 = vunpack.c.h.b16 %v182
  %v205 = vunpack.c.l.b16 %v183
  %v206 = vunpack.c.h.b16 %v183
  %v207 = vunpack.c.l.b16 %v184
  %v208 = vunpack.c.h.b16 %v184
  %v209 = vpack.c.b16 %v195, %v193
  %v210 = vpack.c.b16 %v196, %v194
  %v211 = vpack.c.b16 %v199, %v197
  %v212 = vpack.c.b16 %v200, %v198
  %v213 = vpack.c.b16 %v203, %v201
  %v214 = vpack.c.b16 %v204, %v202
  %v215 = vpack.c.b16 %v207, %v205
  %v216 = vpack.c.b16 %v208, %v206
  %225 = vmatpush.bf16.msra.mxu0 0
  %226 = vmatpush.bf16.msra.mxu0 0
  %227 = vmatpush.bf16.msra.mxu0 0
  %228 = vmatpush.bf16.msra.mxu0 0
  %229 = vmatpush.bf16.msra.mxu0 %v215
  %230 = vmatpush.bf16.msra.mxu0 %v213
  %231 = vmatpush.bf16.msra.mxu0 %v211
  %232 = vmatpush.bf16.msra.mxu0 %v209
  %233 = vmatmul.bf16.gmra.mxu0 %v147
  %v234 = vpop.f32.mrf.mxu0
  %v235 = vadd.f32 0.0, %v234
  %v236 = vpop.f32.mrf.mxu0
  %v237 = vadd.f32 0.0, %v236
  %238 = vdwg.mxu0
  %239 = vmatpush.bf16.msra.mxu0 0
  %240 = vmatpush.bf16.msra.mxu0 0
  %241 = vmatpush.bf16.msra.mxu0 0
  %242 = vmatpush.bf16.msra.mxu0 0
  %243 = vmatpush.bf16.msra.mxu0 %v216
  %244 = vmatpush.bf16.msra.mxu0 %v214
  %245 = vmatpush.bf16.msra.mxu0 %v212
  %246 = vmatpush.bf16.msra.mxu0 %v210
  %247 = vmatmul.bf16.gmra.mxu0 %v147
  %v248 = vpop.f32.mrf.mxu0
  %v249 = vadd.f32 0.0, %v248
  %v250 = vpop.f32.mrf.mxu0
  %v251 = vadd.f32 0.0, %v250
  %252 = vdwg.mxu0
  %v253 = vxor.u32 %v159, 2147483648
  %v254 = vxor.u32 %v173, 2147483648
  %v255 = vxor.u32 %v161, 2147483648
  %v256 = vxor.u32 %v175, 2147483648
  %v257 = vmul.f32 %v253, 1.442695
  %v258 = vpow.pop %v257
  %v259 = vmul.f32 %v254, 1.442695
  %v260 = vpow.pop %v259
  %v261 = vmul.f32 %v255, 1.442695
  %v262 = vpow.pop %v261
  %v263 = vmul.f32 %v256, 1.442695
  %v264 = vpow.pop %v263
  %v265 = vadd.f32 %v258, 1.0
  %v266 = vadd.f32 %v260, 1.0
  %v267 = vadd.f32 %v262, 1.0
  %v268 = vadd.f32 %v264, 1.0
  %v269 = vrcp.pop %v265
  %v270 = vmul.f32 %v265, %v269
  %v271 = vsub.f32 1.0, %v270
  %v272 = vmul.f32 %v269, %v271
  %v273 = vadd.f32 %v269, %v272
  %vm274 = vweird.f32 %v265
  %vm275 = vweird.f32 %v269
  %vm276 = vmor %vm274, %vm275
  %v277 = vsel %vm276, %v269, %v273
  %v278 = vand.u32 2147483647, %v265
  %vm279 = vcmp.eq.f32.partialorder %v278, 8.507059e+37
  %v280 = vand.u32 %v265, 2147483648
  %v281 = vor.u32 1.1754944e-38, %v280
  %v282 = vsel %vm279, %v281, %v277
  %v283 = vmul.f32 1.0, %v282
  %v284 = vrcp.pop %v266
  %v285 = vmul.f32 %v266, %v284
  %v286 = vsub.f32 1.0, %v285
  %v287 = vmul.f32 %v284, %v286
  %v288 = vadd.f32 %v284, %v287
  %vm289 = vweird.f32 %v266
  %vm290 = vweird.f32 %v284
  %vm291 = vmor %vm289, %vm290
  %v292 = vsel %vm291, %v284, %v288
  %v293 = vand.u32 2147483647, %v266
  %vm294 = vcmp.eq.f32.partialorder %v293, 8.507059e+37
  %v295 = vand.u32 %v266, 2147483648
  %v296 = vor.u32 1.1754944e-38, %v295
  %v297 = vsel %vm294, %v296, %v292
  %v298 = vmul.f32 1.0, %v297
  %v299 = vrcp.pop %v267
  %v300 = vmul.f32 %v267, %v299
  %v301 = vsub.f32 1.0, %v300
  %v302 = vmul.f32 %v299, %v301
  %v303 = vadd.f32 %v299, %v302
  %vm304 = vweird.f32 %v267
  %vm305 = vweird.f32 %v299
  %vm306 = vmor %vm304, %vm305
  %v307 = vsel %vm306, %v299, %v303
  %v308 = vand.u32 2147483647, %v267
  %vm309 = vcmp.eq.f32.partialorder %v308, 8.507059e+37
  %v310 = vand.u32 %v267, 2147483648
  %v311 = vor.u32 1.1754944e-38, %v310
  %v312 = vsel %vm309, %v311, %v307
  %v313 = vmul.f32 1.0, %v312
  %v314 = vrcp.pop %v268
  %v315 = vmul.f32 %v268, %v314
  %v316 = vsub.f32 1.0, %v315
  %v317 = vmul.f32 %v314, %v316
  %v318 = vadd.f32 %v314, %v317
  %vm319 = vweird.f32 %v268
  %vm320 = vweird.f32 %v314
  %vm321 = vmor %vm319, %vm320
  %v322 = vsel %vm321, %v314, %v318
  %v323 = vand.u32 2147483647, %v268
  %vm324 = vcmp.eq.f32.partialorder %v323, 8.507059e+37
  %v325 = vand.u32 %v268, 2147483648
  %v326 = vor.u32 1.1754944e-38, %v325
  %v327 = vsel %vm324, %v326, %v322
  %v328 = vmul.f32 1.0, %v327
  %v329 = vmul.f32 %v159, %v283
  %v330 = vmul.f32 %v173, %v298
  %v331 = vmul.f32 %v161, %v313
  %v332 = vmul.f32 %v175, %v328
  %v333 = vmul.f32 %v329, %v235
  %v334 = vmul.f32 %v330, %v249
  %v335 = vmul.f32 %v331, %v237
  %v336 = vmul.f32 %v332, %v251
  %v337 = vld [vmem:[#allocation2] sm:$0xff]
  %v338 = vld [vmem:[#allocation2 + $0x8] sm:$0xff]
  %v339 = vpack.c.bf16 %v335, %v333
  %v340 = vpack.c.bf16 %v336, %v334
  %v341 = vld [vmem:[%s5] sm:$0xf]
  %v342 = vld [vmem:[%s5 + $0x4] sm:$0xf]
  %v343 = vld [vmem:[%s5 + $0x8] sm:$0xf]
  %v344 = vld [vmem:[%s5 + $0xc] sm:$0xf]
  %v345 = vld [vmem:[%s5 + $0x10] sm:$0xf]
  %v346 = vld [vmem:[%s5 + $0x14] sm:$0xf]
  %v347 = vld [vmem:[%s5 + $0x18] sm:$0xf]
  %v348 = vld [vmem:[%s5 + $0x1c] sm:$0xf]
  %v349 = vld [vmem:[%s5 + $0x20] sm:$0xf]
  %v350 = vld [vmem:[%s5 + $0x24] sm:$0xf]
  %v351 = vld [vmem:[%s5 + $0x28] sm:$0xf]
  %v352 = vld [vmem:[%s5 + $0x2c] sm:$0xf]
  %v353 = vld [vmem:[%s5 + $0x30] sm:$0xf]
  %v354 = vld [vmem:[%s5 + $0x34] sm:$0xf]
  %v355 = vld [vmem:[%s5 + $0x38] sm:$0xf]
  %v356 = vld [vmem:[%s5 + $0x3c] sm:$0xf]
  %v357 = vld [vmem:[%s5 + $0x40] sm:$0xf]
  %v358 = vld [vmem:[%s5 + $0x44] sm:$0xf]
  %v359 = vld [vmem:[%s5 + $0x48] sm:$0xf]
  %v360 = vld [vmem:[%s5 + $0x4c] sm:$0xf]
  %v361 = vld [vmem:[%s5 + $0x50] sm:$0xf]
  %v362 = vld [vmem:[%s5 + $0x54] sm:$0xf]
  %v363 = vld [vmem:[%s5 + $0x58] sm:$0xf]
  %v364 = vld [vmem:[%s5 + $0x5c] sm:$0xf]
  %v365 = vld [vmem:[%s5 + $0x60] sm:$0xf]
  %v366 = vld [vmem:[%s5 + $0x64] sm:$0xf]
  %v367 = vld [vmem:[%s5 + $0x68] sm:$0xf]
  %v368 = vld [vmem:[%s5 + $0x6c] sm:$0xf]
  %v369 = vld [vmem:[%s5 + $0x70] sm:$0xf]
  %v370 = vld [vmem:[%s5 + $0x74] sm:$0xf]
  %v371 = vld [vmem:[%s5 + $0x78] sm:$0xf]
  %v372 = vld [vmem:[%s5 + $0x7c] sm:$0xf]
  %v405 = vunpack.c.l.b16 %v341
  %v406 = vunpack.c.l.b16 %v342
  %v407 = vunpack.c.l.b16 %v343
  %v408 = vunpack.c.l.b16 %v344
  %v409 = vunpack.c.l.b16 %v345
  %v410 = vunpack.c.l.b16 %v346
  %v411 = vunpack.c.l.b16 %v347
  %v412 = vunpack.c.l.b16 %v348
  %v413 = vunpack.c.l.b16 %v349
  %v414 = vunpack.c.l.b16 %v350
  %v415 = vunpack.c.l.b16 %v351
  %v416 = vunpack.c.l.b16 %v352
  %v417 = vunpack.c.l.b16 %v353
  %v418 = vunpack.c.l.b16 %v354
  %v419 = vunpack.c.l.b16 %v355
  %v420 = vunpack.c.l.b16 %v356
  %v421 = vunpack.c.l.b16 %v357
  %v422 = vunpack.c.l.b16 %v358
  %v423 = vunpack.c.l.b16 %v359
  %v424 = vunpack.c.l.b16 %v360
  %v425 = vunpack.c.l.b16 %v361
  %v426 = vunpack.c.l.b16 %v362
  %v427 = vunpack.c.l.b16 %v363
  %v428 = vunpack.c.l.b16 %v364
  %v429 = vunpack.c.l.b16 %v365
  %v430 = vunpack.c.l.b16 %v366
  %v431 = vunpack.c.l.b16 %v367
  %v432 = vunpack.c.l.b16 %v368
  %v433 = vunpack.c.l.b16 %v369
  %v434 = vunpack.c.l.b16 %v370
  %v435 = vunpack.c.l.b16 %v371
  %v436 = vunpack.c.l.b16 %v372
  %v437 = vpack.c.b16 %v406, %v405
  %v438 = vpack.c.b16 %v408, %v407
  %v439 = vpack.c.b16 %v410, %v409
  %v440 = vpack.c.b16 %v412, %v411
  %v441 = vpack.c.b16 %v414, %v413
  %v442 = vpack.c.b16 %v416, %v415
  %v443 = vpack.c.b16 %v418, %v417
  %v444 = vpack.c.b16 %v420, %v419
  %v445 = vpack.c.b16 %v422, %v421
  %v446 = vpack.c.b16 %v424, %v423
  %v447 = vpack.c.b16 %v426, %v425
  %v448 = vpack.c.b16 %v428, %v427
  %v449 = vpack.c.b16 %v430, %v429
  %v450 = vpack.c.b16 %v432, %v431
  %v451 = vpack.c.b16 %v434, %v433
  %v452 = vpack.c.b16 %v436, %v435
  %469 = vmatpush.bf16.msra.mxu0 %v444
  %470 = vmatpush.bf16.msra.mxu0 %v443
  %471 = vmatpush.bf16.msra.mxu0 %v442
  %472 = vmatpush.bf16.msra.mxu0 %v441
  %473 = vmatpush.bf16.msra.mxu0 %v440
  %474 = vmatpush.bf16.msra.mxu0 %v439
  %475 = vmatpush.bf16.msra.mxu0 %v438
  %476 = vmatpush.bf16.msra.mxu0 %v437
  %477 = vmatmul.bf16.gmra.mxu0 %v339
  %v478 = vpop.f32.mrf.mxu0
  %v479 = vadd.f32 0.0, %v478
  %v480 = vpop.f32.mrf.mxu0
  %v481 = vadd.f32 0.0, %v480
  %482 = vdwg.mxu0
  %483 = vmatpush.bf16.msra.mxu0 %v452
  %484 = vmatpush.bf16.msra.mxu0 %v451
  %485 = vmatpush.bf16.msra.mxu0 %v450
  %486 = vmatpush.bf16.msra.mxu0 %v449
  %487 = vmatpush.bf16.msra.mxu0 %v448
  %488 = vmatpush.bf16.msra.mxu0 %v447
  %489 = vmatpush.bf16.msra.mxu0 %v446
  %490 = vmatpush.bf16.msra.mxu0 %v445
  %491 = vmatmul.bf16.gmra.mxu0 %v340
  %v492 = vpop.f32.mrf.mxu0
  %v493 = vadd.f32 %v479, %v492
  %v494 = vpop.f32.mrf.mxu0
  %v495 = vadd.f32 %v481, %v494
  %496 = vdwg.mxu0
  %v497 = vadd.f32 %v337, %v493
  %v498 = vadd.f32 %v338, %v495
  %499 = vst.msk [vmem:[#allocation2] sm:$0xff] %vm33, %v497
  %500 = vst.msk [vmem:[#allocation2 + $0x8] sm:$0xff] %vm33, %v498
  // Predicated region
  $region30: #{gpt_forward.12} parent=0 // pred_check
    %p501 = pneg %p24
  $region31: #{gpt_forward.12} parent=0 // pred_check_branch
    %503 = sbr.rel (%p501) target = $region33
  $region32: #{gpt_forward.12} parent=0 // pred_region
    %v504 = vld [vmem:[#allocation2] sm:$0xff]
    %v505 = vld [vmem:[#allocation2 + $0x8] sm:$0xff]
    %506 = vst.msk [vmem:[%s6] sm:$0xff] %vm33, %v504
    %507 = vst.msk [vmem:[%s6 + $0x8] sm:$0xff] %vm33, %v505
  $region33: #{gpt_forward.12} parent=0 // pred_fallthru
    _
  // Predicated region
  $region34: #{gpt_forward.12} parent=0 // pred_check
    _
  $region35: #{gpt_forward.12} parent=0 // pred_check_branch
    %509 = sbr.rel (0) target = $region37
  $region36: #{gpt_forward.12} parent=0 // pred_region
    _
  $region37: #{gpt_forward.12} parent=0 // pred_fallthru
    _
  // Predicated region
  $region38: #{gpt_forward.12} parent=0 // pred_check
    _
  $region39: #{gpt_forward.12} parent=0 // pred_check_branch
    %511 = sbr.rel (0) target = $region41
  $region40: #{gpt_forward.12} parent=0 // pred_region
    _
  $region41: #{gpt_forward.12} parent=0 // pred_fallthru
    _

// kernel: gpt_forward.17
$region0: #{gpt_forward.17}
  #allocation0 [shape = 'u32[]', space=smem, size = 0x4, offset = 0x4, fixed_abs, tag = 'smem constant byte address 0x4 - core index']
  #allocation1 [shape = 'u32[72,128]{1,0:T(1,128)}', space=vmem, size = 0x9000, scoped, tag = 'internal scratch']
  %s0 = inlined_call_operand.vmem [shape: f32[16,64], index: 0, kind: input, shape index: {}]
  %s1 = inlined_call_operand.vmem [shape: f32[1,64], index: 1, kind: input, shape index: {}]
  %s2 = inlined_call_operand.vmem [shape: f32[1,64], index: 2, kind: input, shape index: {}]
  %s3 = inlined_call_operand.vmem [shape: bf16[128,64], index: 3, kind: input, shape index: {}]
  %s4 = inlined_call_operand.hbm [shape: f32[16,128], index: 4, kind: output, shape index: {}]
  %s5 = sld [smem:[#allocation0]]
  $region26: #{gpt_forward.17} parent=0
    _
  %s7 = ssub.s32 1, %s5
  %s8 = scalar_select 0, %s7, %s5
  $region1: #{gpt_forward.17} parent=0
    #allocation2 [shape = 'u8[8192]{0}', space=vmem, size = 0x2000, scoped, tag = 'output window, operand 0, single buffered']
    #allocation3 [shape = 's32[1]{0}', space=sflag, size = 0x4, scoped, tag = 'scoped memory for gpt_forward.17']
    %9 = vsyncpa [#allocation3], 0
    // Predicated region
    $region2: #{gpt_forward.17} parent=1 // pred_check
      _
    $region3: #{gpt_forward.17} parent=1 // pred_check_branch
      %11 = sbr.rel (0) target = $region5
    $region4: #{gpt_forward.17} parent=1 // pred_region
      _
    $region5: #{gpt_forward.17} parent=1 // pred_fallthru
      _
    // Predicated region
    $region6: #{gpt_forward.17} parent=1 // pred_check
      _
    $region7: #{gpt_forward.17} parent=1 // pred_check_branch
      %13 = sbr.rel (0) target = $region9
    $region8: #{gpt_forward.17} parent=1 // pred_region
      _
    $region9: #{gpt_forward.17} parent=1 // pred_fallthru
      _
    // Predicated region
    $region10: #{gpt_forward.17} parent=1 // pred_check
      _
    $region11: #{gpt_forward.17} parent=1 // pred_check_branch
      %15 = sbr.rel (0) target = $region13
    $region12: #{gpt_forward.17} parent=1 // pred_region
      _
    $region13: #{gpt_forward.17} parent=1 // pred_fallthru
      _
    // Predicated region
    $region14: #{gpt_forward.17} parent=1 // pred_check
      _
    $region15: #{gpt_forward.17} parent=1 // pred_check_branch
      %17 = sbr.rel (0) target = $region17
    $region16: #{gpt_forward.17} parent=1 // pred_region
      _
    $region17: #{gpt_forward.17} parent=1 // pred_fallthru
      _
    %v18 = vld [vmem:[%s0] sm:$0xff]
    %v19 = vld [vmem:[%s0 + $0x8] sm:$0xff]
    %vm20 = vcmask 523264
    %v21 = vsel %vm20, %v18, 0.0
    %22 = vadd.xlane.f32.xlu0 %v21
    %v23 = vpop.xlane.xlu0 %22
    %v24 = vsel %vm20, %v19, 0.0
    %25 = vadd.xlane.f32.xlu0 %v24
    %v26 = vpop.xlane.xlu0 %25
    %v27 = vrcp.pop 64.0
    %v28 = vmul.f32 64.0, %v27
    %v29 = vsub.f32 1.0, %v28
    %v30 = vmul.f32 %v27, %v29
    %v31 = vadd.f32 %v27, %v30
    %vm32 = vweird.f32 %v27
    %v33 = vsel %vm32, %v27, %v31
    %v34 = vmul.f32 %v23, %v33
    %v35 = vmul.f32 %v26, %v33
    %v36 = vsub.f32 %v18, %v34
    %v37 = vsub.f32 %v19, %v35
    %v38 = vmul.f32 %v36, %v36
    %v39 = vmul.f32 %v37, %v37
    %v40 = vsel %vm20, %v38, 0.0
    %41 = vadd.xlane.f32.xlu0 %v40
    %v42 = vpop.xlane.xlu0 %41
    %v43 = vsel %vm20, %v39, 0.0
    %44 = vadd.xlane.f32.xlu0 %v43
    %v45 = vpop.xlane.xlu0 %44
    %v46 = vmul.f32 %v42, %v33
    %v47 = vmul.f32 %v45, %v33
    %v48 = vadd.f32 %v46, 1e-05
    %v49 = vadd.f32 %v47, 1e-05
    %v50 = vrsqrt.pop %v48
    %v51 = vmul.f32 %v50, %v48
    %v52 = vmul.f32 %v51, %v50
    %v53 = vmul.f32 0.5, %v52
    %v54 = vsub.f32 1.5, %v53
    %v55 = vmul.f32 %v50, %v54
    %vm56 = vweird.f32 %v48
    %vm57 = vweird.f32 %v50
    %vm58 = vmor %vm56, %vm57
    %v59 = vsel %vm58, %v50, %v55
    %v60 = vrsqrt.pop %v49
    %v61 = vmul.f32 %v60, %v49
    %v62 = vmul.f32 %v61, %v60
    %v63 = vmul.f32 0.5, %v62
    %v64 = vsub.f32 1.5, %v63
    %v65 = vmul.f32 %v60, %v64
    %vm66 = vweird.f32 %v49
    %vm67 = vweird.f32 %v60
    %vm68 = vmor %vm66, %vm67
    %v69 = vsel %vm68, %v60, %v65
    %v70 = vmul.f32 %v36, %v59
    %v71 = vmul.f32 %v37, %v69
    %v72 = vld [vmem:[%s1] sm:$0x1]
    %v74 = vperm.slane %v72, 0
    %v76 = vmul.f32 %v70, %v74
    %v77 = vmul.f32 %v71, %v74
    %v78 = vld [vmem:[%s2] sm:$0x1]
    %v80 = vperm.slane %v78, 0
    %v82 = vadd.f32 %v76, %v80
    %v83 = vadd.f32 %v77, %v80
    %v84 = vpack.c.bf16 %v83, %v82
    %v85 = vld [vmem:[%s3] sm:$0xf]
    %v86 = vld [vmem:[%s3 + $0x4] sm:$0xf]
    %v87 = vld [vmem:[%s3 + $0x8] sm:$0xf]
    %v88 = vld [vmem:[%s3 + $0xc] sm:$0xf]
    %v89 = vld [vmem:[%s3 + $0x10] sm:$0xf]
    %v90 = vld [vmem:[%s3 + $0x14] sm:$0xf]
    %v91 = vld [vmem:[%s3 + $0x18] sm:$0xf]
    %v92 = vld [vmem:[%s3 + $0x1c] sm:$0xf]
    %v93 = vld [vmem:[%s3 + $0x20] sm:$0xf]
    %v94 = vld [vmem:[%s3 + $0x24] sm:$0xf]
    %v95 = vld [vmem:[%s3 + $0x28] sm:$0xf]
    %v96 = vld [vmem:[%s3 + $0x2c] sm:$0xf]
    %v97 = vld [vmem:[%s3 + $0x30] sm:$0xf]
    %v98 = vld [vmem:[%s3 + $0x34] sm:$0xf]
    %v99 = vld [vmem:[%s3 + $0x38] sm:$0xf]
    %v100 = vld [vmem:[%s3 + $0x3c] sm:$0xf]
    %v117 = vunpack.c.l.b16 %v85
    %v118 = vunpack.c.l.b16 %v86
    %v119 = vunpack.c.l.b16 %v87
    %v120 = vunpack.c.l.b16 %v88
    %v121 = vunpack.c.l.b16 %v89
    %v122 = vunpack.c.l.b16 %v90
    %v123 = vunpack.c.l.b16 %v91
    %v124 = vunpack.c.l.b16 %v92
    %v125 = vunpack.c.l.b16 %v93
    %v126 = vunpack.c.l.b16 %v94
    %v127 = vunpack.c.l.b16 %v95
    %v128 = vunpack.c.l.b16 %v96
    %v129 = vunpack.c.l.b16 %v97
    %v130 = vunpack.c.l.b16 %v98
    %v131 = vunpack.c.l.b16 %v99
    %v132 = vunpack.c.l.b16 %v100
    %v133 = vpack.c.b16 %v118, %v117
    %v134 = vpack.c.b16 %v120, %v119
    %v135 = vpack.c.b16 %v122, %v121
    %v136 = vpack.c.b16 %v124, %v123
    %v137 = vpack.c.b16 %v126, %v125
    %v138 = vpack.c.b16 %v128, %v127
    %v139 = vpack.c.b16 %v130, %v129
    %v140 = vpack.c.b16 %v132, %v131
    %v142 = vsel %vm20, %v84, 0
    %v145 = vsel %vm20, %v133, 0
    %v148 = vsel %vm20, %v134, 0
    %v151 = vsel %vm20, %v135, 0
    %v154 = vsel %vm20, %v136, 0
    %v157 = vsel %vm20, %v137, 0
    %v160 = vsel %vm20, %v138, 0
    %v163 = vsel %vm20, %v139, 0
    %v166 = vsel %vm20, %v140, 0
    %168 = vmatpush.bf16.xpose.msra.mxu0 %v166
    %169 = vmatpush.bf16.xpose.msra.mxu0 %v163
    %170 = vmatpush.bf16.xpose.msra.mxu0 %v160
    %171 = vmatpush.bf16.xpose.msra.mxu0 %v157
    %172 = vmatpush.bf16.xpose.msra.mxu0 %v154
    %173 = vmatpush.bf16.xpose.msra.mxu0 %v151
    %174 = vmatpush.bf16.xpose.msra.mxu0 %v148
    %175 = vmatpush.bf16.xpose.msra.mxu0 %v145
    %176 = vmatmul.bf16.gmra.mxu0 %v142
    %v177 = vpop.f32.mrf.mxu0
    %v178 = vadd.f32 0.0, %v177
    %v179 = vpop.f32.mrf.mxu0
    %v180 = vadd.f32 0.0, %v179
    %181 = vdwg.mxu0
    %182 = vst [vmem:[#allocation2] sm:$0xff] %v178
    %183 = vst [vmem:[#allocation2 + $0x8] sm:$0xff] %v180
    // Predicated region
    $region18: #{gpt_forward.17} parent=1 // pred_check
      _
    $region19: #{gpt_forward.17} parent=1 // pred_check_branch
      %185 = sbr.rel (0) target = $region21
    $region20: #{gpt_forward.17} parent=1 // pred_region
      %187 = vsyncadd [#allocation3], 0
      %s188 = sshll.u32 [#allocation2], 4
      %s189 = int_to_ptr.vmem [resolvable:$true] %s188
      %s190 = sshll.u32 %s4, 4
      %s191 = int_to_ptr.hbm [resolvable:$true] %s190
      %196 = dma.vmem_to_hbm [thread:$0]  %s189, 256, %s191, [#allocation3], 128, 128, 8
    $region21: #{gpt_forward.17} parent=1 // pred_fallthru
      _
    // Predicated region
    $region22: #{gpt_forward.17} parent=1 // pred_check
      _
    $region23: #{gpt_forward.17} parent=1 // pred_check_branch
      %198 = sbr.rel (0) target = $region25
    $region24: #{gpt_forward.17} parent=1 // pred_region
      %200 = dma.done [#allocation3], 256
    $region25: #{gpt_forward.17} parent=1 // pred_fallthru
      _
    %201 = vsyncpa [#allocation3], 1

</llo_original>
